<compile_context>
chip_gen: v6e
topology: v6e:2x2x1
jax: 0.10.0
libtpu: 0.0.40
codegen_flags: <defaults>
</compile_context>

<pallas_src>
import math
import functools
import jax
import jax.numpy as jnp
from jax.experimental import pallas as pl
from jax.experimental.pallas import tpu as pltpu


# Original (logical) layer dims and the 128-lane-padded dims actually used.
LAYER_DIMS = [(256, 300), (300, 100), (100, 20), (20, 100), (100, 300), (300, 256)]
PADDED_DIMS = [(256, 384), (384, 128), (128, 128), (128, 128), (128, 384), (384, 256)]

TB_MAX = 1024  # max batch-tile rows (fits comfortably in every generation's VMEM)


def _round_up(x, m):
    return ((x + m - 1) // m) * m


def _choose_tiling(B, tb_max=TB_MAX):
    """Pick a 16-aligned batch tile TB and padded batch B_pad (multiple of TB)."""
    B16 = _round_up(max(B, 16), 16)
    if B16 < 32:
        TB = B16                                   # one tiny tile
    elif B16 <= 2 * tb_max:
        TB = _round_up((B16 + 1) // 2, 16)         # exactly 2 steps -> both TCs on v7x
    else:
        TB = tb_max
    B_pad = _round_up(B16, TB)
    return TB, B_pad


def ae_relu_kernel(x_ref, w1_ref, w2_ref, w3_ref, w4_ref, w5_ref, w6_ref, o_ref):
    """One batch tile through all 6 layers. Everything is VMEM-resident."""
    # f32 -> bf16 cast happens here (cheap VPU work overlapped with MXU).
    h = x_ref[...].astype(jnp.bfloat16)  # (TB, 256)
    # Layers 1..5: matmul (f32 accumulate on MXU), ReLU in f32, cast back to bf16.
    for w_ref in (w1_ref, w2_ref, w3_ref, w4_ref, w5_ref):
        acc = jnp.dot(h, w_ref[...], preferred_element_type=jnp.float32)
        h = jnp.maximum(acc, 0.0).astype(jnp.bfloat16)
    # Final layer: no ReLU; cast to the output dtype (f32 by default).
    out = jnp.dot(h, w6_ref[...], preferred_element_type=jnp.float32)
    o_ref[...] = out.astype(o_ref.dtype)


@functools.partial(jax.jit, static_argnames=("out_dtype",))
def ae_relu_forward(x, weights_bf16, out_dtype=jnp.float32):
    """x: (B, 256) float32; weights_bf16: 6 zero-padded bf16 arrays (PADDED_DIMS)."""
    B, F = x.shape
    assert F == 256

    TB, B_pad = _choose_tiling(B)
    x_p = x if B_pad == B else jnp.pad(x, ((0, B_pad - B), (0, 0)))

    grid = (B_pad // TB,)

    x_spec = pl.BlockSpec((TB, 256), lambda i: (i, 0))
    # Constant index_map: weight block never changes -> DMA'd once, VMEM-resident.
    w_specs = [pl.BlockSpec(dims, lambda i: (0, 0)) for dims in PADDED_DIMS]
    out_spec = pl.BlockSpec((TB, 256), lambda i: (i, 0))

    out_bytes = jnp.dtype(out_dtype).itemsize
    flops = 2 * B_pad * sum(fin * fout for fin, fout in PADDED_DIMS)
    bytes_accessed = (
        sum(fin * fout * 2 for fin, fout in PADDED_DIMS)  # bf16 weights (once)
        + B_pad * 256 * 4                                  # f32 x
        + B_pad * 256 * out_bytes                          # output
    )

    out = pl.pallas_call(
        ae_relu_kernel,
        out_shape=jax.ShapeDtypeStruct((B_pad, 256), out_dtype),
        grid=grid,
        in_specs=[x_spec] + w_specs,
        out_specs=out_spec,
        compiler_params=pltpu.CompilerParams(
            dimension_semantics=("parallel",),
            vmem_limit_bytes=32 * 1024 * 1024,  # headroom for big tiles on v5e
        ),
        cost_estimate=pl.CostEstimate(
            flops=flops, transcendentals=0, bytes_accessed=bytes_accessed
        ),
    )(x_p, *weights_bf16)

    return out if B_pad == B else out[:B]


def init_weights(key):
    """Init matching nn.init.uniform_(-1/sqrt(in_features), 1/sqrt(in_features)).

    Weights are stored transposed vs. PyTorch, i.e. (in_features, out_features),
    so each layer is a plain `h @ W`. Returns:
      ws_f32   : unpadded f32 weights (reference / semantics),
      ws_bf16  : zero-padded (PADDED_DIMS) bf16 weights for the kernel.
    """
    keys = jax.random.split(key, len(LAYER_DIMS))
    ws_f32, ws_bf16 = [], []
    for k, (fin, fout), (pfin, pfout) in zip(keys, LAYER_DIMS, PADDED_DIMS):
        bound = 1.0 / math.sqrt(fin)
        w = jax.random.uniform(k, (fin, fout), jnp.float32, minval=-bound, maxval=bound)
        ws_f32.append(w)
        w_pad = jnp.zeros((pfin, pfout), jnp.float32).at[:fin, :fout].set(w)
        ws_bf16.append(w_pad.astype(jnp.bfloat16))
    return ws_f32, ws_bf16


def ae_relu_reference_f32(x, ws_f32):
    """Pure-JAX f32 reference (module semantics)."""
    h = x
    for i, w in enumerate(ws_f32):
        h = h @ w
        if i != len(ws_f32) - 1:
            h = jnp.maximum(h, 0.0)
    return h


def ae_relu_reference_bf16(x, ws_bf16):
    """Pure-JAX reference mirroring the kernel's bf16/f32-accumulate arithmetic."""
    h = x.astype(jnp.bfloat16)
    for i, w in enumerate(ws_bf16):
        acc = jnp.dot(h, w, preferred_element_type=jnp.float32)
        if i != len(ws_bf16) - 1:
            h = jnp.maximum(acc, 0.0).astype(jnp.bfloat16)
        else:
            h = acc
    return h


if __name__ == "__main__":
    key = jax.random.PRNGKey(0)
    k_w, k_x = jax.random.split(key)

    ws_f32, ws_bf16 = init_weights(k_w)
    B = 8
    x = jax.random.normal(k_x, (B, 256), jnp.float32)

    out = ae_relu_forward(x, ws_bf16)
    out = jax.block_until_ready(out)
    assert out.shape == (B, 256)
    assert out.dtype == jnp.float32

    # Tight check against a reference using identical bf16/f32-accumulate math.
    ref_bf16 = ae_relu_reference_bf16(x, ws_bf16)
    assert jnp.allclose(out, ref_bf16, atol=2e-2, rtol=2e-2)

    # Looser sanity check against the full-f32 module semantics.
    ref_f32 = ae_relu_reference_f32(x, ws_f32)
    assert jnp.allclose(out, ref_f32, atol=5e-2, rtol=5e-2)

    # Exercise a larger, multi-tile batch (2 grid steps -> megacore path on v7x).
    B2 = 160
    x2 = jax.random.normal(jax.random.PRNGKey(1), (B2, 256), jnp.float32)
    out2 = jax.block_until_ready(ae_relu_forward(x2, ws_bf16))
    assert out2.shape == (B2, 256)
    assert jnp.allclose(out2, ae_relu_reference_bf16(x2, ws_bf16), atol=2e-2, rtol=2e-2)

    print("KERNEL_OK")
</pallas_src>

<mosaic_0001>
module attributes {stable_mosaic.version = 11 : i64} {
  func.func @ae_relu_kernel(%arg0: i32, %arg1: memref<16x256xf32, #tpu.memory_space<vmem>>, %arg2: memref<256x384xbf16, #tpu.memory_space<vmem>>, %arg3: memref<384x128xbf16, #tpu.memory_space<vmem>>, %arg4: memref<128x128xbf16, #tpu.memory_space<vmem>>, %arg5: memref<128x128xbf16, #tpu.memory_space<vmem>>, %arg6: memref<128x384xbf16, #tpu.memory_space<vmem>>, %arg7: memref<384x256xbf16, #tpu.memory_space<vmem>>, %arg8: memref<16x256xf32, #tpu.memory_space<vmem>>) attributes {dimension_semantics = [#tpu.dimension_semantics<parallel>], iteration_bounds = array<i64: 1>, scalar_prefetch = 0 : i64, scratch_operands = 0 : i64, tpu.core_type = #tpu.core_type<tc>, window_params = [{transform_indices = @transform_0, window_bounds = array<i64: 16, 256>}, {pipeline_mode = #tpu.pipeline_mode<synchronous>, transform_indices = @transform_1, window_bounds = array<i64: 256, 384>}, {pipeline_mode = #tpu.pipeline_mode<synchronous>, transform_indices = @transform_2, window_bounds = array<i64: 384, 128>}, {pipeline_mode = #tpu.pipeline_mode<synchronous>, transform_indices = @transform_3, window_bounds = array<i64: 128, 128>}, {pipeline_mode = #tpu.pipeline_mode<synchronous>, transform_indices = @transform_4, window_bounds = array<i64: 128, 128>}, {pipeline_mode = #tpu.pipeline_mode<synchronous>, transform_indices = @transform_5, window_bounds = array<i64: 128, 384>}, {pipeline_mode = #tpu.pipeline_mode<synchronous>, transform_indices = @transform_6, window_bounds = array<i64: 384, 256>}, {transform_indices = @transform_7, window_bounds = array<i64: 16, 256>}]} {
    %c0 = arith.constant 0 : index
    %c0_0 = arith.constant 0 : index
    %0 = vector.load %arg1[%c0, %c0_0] : memref<16x256xf32, #tpu.memory_space<vmem>>, vector<16x256xf32>
    %1 = arith.truncf %0 : vector<16x256xf32> to vector<16x256xbf16>
    %c0_1 = arith.constant 0 : index
    %c0_2 = arith.constant 0 : index
    %2 = vector.load %arg2[%c0_1, %c0_2] : memref<256x384xbf16, #tpu.memory_space<vmem>>, vector<256x384xbf16>
    %cst = arith.constant dense<0.000000e+00> : vector<16x384xf32>
    %3 = tpu.matmul %1, %2, %cst {dimension_numbers = #tpu.dot_dimension_numbers<[1], [0], [0], [1], [0, 0, 1, 1], [], []>} : vector<16x256xbf16>, vector<256x384xbf16>, vector<16x384xf32> -> vector<16x384xf32>
    %cst_3 = arith.constant 0.000000e+00 : f32
    %4 = vector.broadcast %cst_3 : f32 to vector<16x384xf32>
    %5 = arith.maximumf %3, %4 : vector<16x384xf32>
    %6 = arith.truncf %5 : vector<16x384xf32> to vector<16x384xbf16>
    %c0_4 = arith.constant 0 : index
    %c0_5 = arith.constant 0 : index
    %7 = vector.load %arg3[%c0_4, %c0_5] : memref<384x128xbf16, #tpu.memory_space<vmem>>, vector<384x128xbf16>
    %cst_6 = arith.constant dense<0.000000e+00> : vector<16x128xf32>
    %8 = tpu.matmul %6, %7, %cst_6 {dimension_numbers = #tpu.dot_dimension_numbers<[1], [0], [0], [1], [0, 0, 1, 1], [], []>} : vector<16x384xbf16>, vector<384x128xbf16>, vector<16x128xf32> -> vector<16x128xf32>
    %cst_7 = arith.constant 0.000000e+00 : f32
    %9 = vector.broadcast %cst_7 : f32 to vector<16x128xf32>
    %10 = arith.maximumf %8, %9 : vector<16x128xf32>
    %11 = arith.truncf %10 : vector<16x128xf32> to vector<16x128xbf16>
    %c0_8 = arith.constant 0 : index
    %c0_9 = arith.constant 0 : index
    %12 = vector.load %arg4[%c0_8, %c0_9] : memref<128x128xbf16, #tpu.memory_space<vmem>>, vector<128x128xbf16>
    %cst_10 = arith.constant dense<0.000000e+00> : vector<16x128xf32>
    %13 = tpu.matmul %11, %12, %cst_10 {dimension_numbers = #tpu.dot_dimension_numbers<[1], [0], [0], [1], [0, 0, 1, 1], [], []>} : vector<16x128xbf16>, vector<128x128xbf16>, vector<16x128xf32> -> vector<16x128xf32>
    %cst_11 = arith.constant 0.000000e+00 : f32
    %14 = vector.broadcast %cst_11 : f32 to vector<16x128xf32>
    %15 = arith.maximumf %13, %14 : vector<16x128xf32>
    %16 = arith.truncf %15 : vector<16x128xf32> to vector<16x128xbf16>
    %c0_12 = arith.constant 0 : index
    %c0_13 = arith.constant 0 : index
    %17 = vector.load %arg5[%c0_12, %c0_13] : memref<128x128xbf16, #tpu.memory_space<vmem>>, vector<128x128xbf16>
    %cst_14 = arith.constant dense<0.000000e+00> : vector<16x128xf32>
    %18 = tpu.matmul %16, %17, %cst_14 {dimension_numbers = #tpu.dot_dimension_numbers<[1], [0], [0], [1], [0, 0, 1, 1], [], []>} : vector<16x128xbf16>, vector<128x128xbf16>, vector<16x128xf32> -> vector<16x128xf32>
    %cst_15 = arith.constant 0.000000e+00 : f32
    %19 = vector.broadcast %cst_15 : f32 to vector<16x128xf32>
    %20 = arith.maximumf %18, %19 : vector<16x128xf32>
    %21 = arith.truncf %20 : vector<16x128xf32> to vector<16x128xbf16>
    %c0_16 = arith.constant 0 : index
    %c0_17 = arith.constant 0 : index
    %22 = vector.load %arg6[%c0_16, %c0_17] : memref<128x384xbf16, #tpu.memory_space<vmem>>, vector<128x384xbf16>
    %cst_18 = arith.constant dense<0.000000e+00> : vector<16x384xf32>
    %23 = tpu.matmul %21, %22, %cst_18 {dimension_numbers = #tpu.dot_dimension_numbers<[1], [0], [0], [1], [0, 0, 1, 1], [], []>} : vector<16x128xbf16>, vector<128x384xbf16>, vector<16x384xf32> -> vector<16x384xf32>
    %cst_19 = arith.constant 0.000000e+00 : f32
    %24 = vector.broadcast %cst_19 : f32 to vector<16x384xf32>
    %25 = arith.maximumf %23, %24 : vector<16x384xf32>
    %26 = arith.truncf %25 : vector<16x384xf32> to vector<16x384xbf16>
    %c0_20 = arith.constant 0 : index
    %c0_21 = arith.constant 0 : index
    %27 = vector.load %arg7[%c0_20, %c0_21] : memref<384x256xbf16, #tpu.memory_space<vmem>>, vector<384x256xbf16>
    %cst_22 = arith.constant dense<0.000000e+00> : vector<16x256xf32>
    %28 = tpu.matmul %26, %27, %cst_22 {dimension_numbers = #tpu.dot_dimension_numbers<[1], [0], [0], [1], [0, 0, 1, 1], [], []>} : vector<16x384xbf16>, vector<384x256xbf16>, vector<16x256xf32> -> vector<16x256xf32>
    %c0_23 = arith.constant 0 : index
    %c0_24 = arith.constant 0 : index
    %29 = vector.load %arg8[%c0_23, %c0_24] : memref<16x256xf32, #tpu.memory_space<vmem>>, vector<16x256xf32>
    tpu.vector_store %arg8[%c0_23, %c0_24], %28 {strides = array<i32>} : memref<16x256xf32, #tpu.memory_space<vmem>>, vector<16x256xf32>,
    return
  }
  func.func @transform_0(%arg0: i32) -> (i32, i32) {
    %c0_i32 = arith.constant 0 : i32
    %c0_i32_0 = arith.constant 0 : i32
    return %arg0, %c0_i32 : i32, i32
  }
  func.func @transform_1(%arg0: i32) -> (i32, i32) {
    %c0_i32 = arith.constant 0 : i32
    %c0_i32_0 = arith.constant 0 : i32
    %c0_i32_1 = arith.constant 0 : i32
    return %c0_i32, %c0_i32_0 : i32, i32
  }
  func.func @transform_2(%arg0: i32) -> (i32, i32) {
    %c0_i32 = arith.constant 0 : i32
    %c0_i32_0 = arith.constant 0 : i32
    %c0_i32_1 = arith.constant 0 : i32
    return %c0_i32, %c0_i32_0 : i32, i32
  }
  func.func @transform_3(%arg0: i32) -> (i32, i32) {
    %c0_i32 = arith.constant 0 : i32
    %c0_i32_0 = arith.constant 0 : i32
    %c0_i32_1 = arith.constant 0 : i32
    return %c0_i32, %c0_i32_0 : i32, i32
  }
  func.func @transform_4(%arg0: i32) -> (i32, i32) {
    %c0_i32 = arith.constant 0 : i32
    %c0_i32_0 = arith.constant 0 : i32
    %c0_i32_1 = arith.constant 0 : i32
    return %c0_i32, %c0_i32_0 : i32, i32
  }
  func.func @transform_5(%arg0: i32) -> (i32, i32) {
    %c0_i32 = arith.constant 0 : i32
    %c0_i32_0 = arith.constant 0 : i32
    %c0_i32_1 = arith.constant 0 : i32
    return %c0_i32, %c0_i32_0 : i32, i32
  }
  func.func @transform_6(%arg0: i32) -> (i32, i32) {
    %c0_i32 = arith.constant 0 : i32
    %c0_i32_0 = arith.constant 0 : i32
    %c0_i32_1 = arith.constant 0 : i32
    return %c0_i32, %c0_i32_0 : i32, i32
  }
  func.func @transform_7(%arg0: i32) -> (i32, i32) {
    %c0_i32 = arith.constant 0 : i32
    %c0_i32_0 = arith.constant 0 : i32
    return %arg0, %c0_i32 : i32, i32
  }
}

</mosaic_0001>

<llo_original>
// kernel: ae_relu_forward.1
$region0: #{ae_relu_forward.1}
  #allocation0 [shape = 'u32[]', space=smem, size = 0x4, offset = 0x4, fixed_abs, tag = 'smem constant byte address 0x4 - core index']
  #allocation1 [shape = 'u32[144,128]{1,0:T(1,128)}', space=vmem, size = 0x12000, scoped, tag = 'internal scratch']
  %s0 = inlined_call_operand.vmem [shape: f32[16,256], index: 0, kind: input, shape index: {}]
  %s1 = inlined_call_operand.hbm [shape: bf16[256,384], index: 1, kind: input, shape index: {}]
  %s2 = inlined_call_operand.hbm [shape: bf16[384,128], index: 2, kind: input, shape index: {}]
  %s3 = inlined_call_operand.hbm [shape: bf16[128,128], index: 3, kind: input, shape index: {}]
  %s4 = inlined_call_operand.hbm [shape: bf16[128,128], index: 4, kind: input, shape index: {}]
  %s5 = inlined_call_operand.hbm [shape: bf16[128,384], index: 5, kind: input, shape index: {}]
  %s6 = inlined_call_operand.hbm [shape: bf16[384,256], index: 6, kind: input, shape index: {}]
  %s7 = inlined_call_operand.vmem [shape: f32[16,256], index: 7, kind: output, shape index: {}]
  %s8 = sld [smem:[#allocation0]]
  $region62: #{ae_relu_forward.1} parent=0
    _
  %s10 = ssub.s32 1, %s8
  %s11 = scalar_select 0, %s10, %s8
  $region1: #{ae_relu_forward.1} parent=0
    #allocation2 [shape = 'u8[196608]{0}', space=vmem, size = 0x30000, scoped, tag = 'input window, operand 1, single buffered']
    #allocation3 [shape = 's32[1]{0}', space=sflag, size = 0x4, scoped, tag = 'scoped memory for ae_relu_forward.1']
    #allocation4 [shape = 'u8[98304]{0}', space=vmem, size = 0x18000, scoped, tag = 'input window, operand 2, single buffered']
    #allocation5 [shape = 's32[1]{0}', space=sflag, size = 0x4, scoped, tag = 'scoped memory for ae_relu_forward.1']
    #allocation6 [shape = 'u8[32768]{0}', space=vmem, size = 0x8000, scoped, tag = 'input window, operand 3, single buffered']
    #allocation7 [shape = 'u8[32768]{0}', space=vmem, size = 0x8000, scoped, tag = 'input window, operand 4, single buffered']
    #allocation8 [shape = 's32[1]{0}', space=sflag, size = 0x4, scoped, tag = 'scoped memory for ae_relu_forward.1']
    #allocation9 [shape = 'u8[98304]{0}', space=vmem, size = 0x18000, scoped, tag = 'input window, operand 5, single buffered']
    #allocation10 [shape = 'u8[196608]{0}', space=vmem, size = 0x30000, scoped, tag = 'input window, operand 6, single buffered']
    #allocation11 [shape = 's32[1]{0}', space=sflag, size = 0x4, scoped, tag = 'scoped memory for ae_relu_forward.1']
    %12 = vsyncpa [#allocation3], 0
    %13 = vsyncpa [#allocation5], 0
    %14 = vsyncpa [#allocation8], 0
    %15 = vsyncpa [#allocation11], 0
    // Predicated region
    $region2: #{ae_relu_forward.1} parent=1 // pred_check
      _
    $region3: #{ae_relu_forward.1} parent=1 // pred_check_branch
      %17 = sbr.rel (0) target = $region5
    $region4: #{ae_relu_forward.1} parent=1 // pred_region
      _
    $region5: #{ae_relu_forward.1} parent=1 // pred_fallthru
      _
    // Predicated region
    $region6: #{ae_relu_forward.1} parent=1 // pred_check
      _
    $region7: #{ae_relu_forward.1} parent=1 // pred_check_branch
      %19 = sbr.rel (0) target = $region9
    $region8: #{ae_relu_forward.1} parent=1 // pred_region
      %s21 = ssub.s32 6144, 6144
      %22 = vsyncadd [#allocation3], %s21
      %s23 = sshll.u32 [#allocation2], 4
      %s24 = int_to_ptr.vmem [resolvable:$true] %s23
      %29 = dma.hbm_to_vmem [thread:$0]  %s1, 6144, %s24, [#allocation3], 192, 192, 12
    $region9: #{ae_relu_forward.1} parent=1 // pred_fallthru
      _
    // Predicated region
    $region10: #{ae_relu_forward.1} parent=1 // pred_check
      _
    $region11: #{ae_relu_forward.1} parent=1 // pred_check_branch
      %31 = sbr.rel (0) target = $region13
    $region12: #{ae_relu_forward.1} parent=1 // pred_region
      %s33 = ssub.s32 3072, 3072
      %34 = vsyncadd [#allocation5], %s33
      %s35 = sshll.u32 [#allocation4], 4
      %s36 = int_to_ptr.vmem [resolvable:$true] %s35
      %41 = dma.hbm_to_vmem [thread:$0]  %s2, 3072, %s36, [#allocation5], 64, 64, 4
    $region13: #{ae_relu_forward.1} parent=1 // pred_fallthru
      _
    // Predicated region
    $region14: #{ae_relu_forward.1} parent=1 // pred_check
      _
    $region15: #{ae_relu_forward.1} parent=1 // pred_check_branch
      %43 = sbr.rel (0) target = $region17
    $region16: #{ae_relu_forward.1} parent=1 // pred_region
      %s45 = ssub.s32 1024, 1024
      %46 = vsyncadd [#allocation5], %s45
      %s47 = sshll.u32 [#allocation6], 4
      %s48 = int_to_ptr.vmem [resolvable:$true] %s47
      %53 = dma.hbm_to_vmem [thread:$0]  %s3, 1024, %s48, [#allocation5], 64, 64, 4
    $region17: #{ae_relu_forward.1} parent=1 // pred_fallthru
      _
    // Predicated region
    $region18: #{ae_relu_forward.1} parent=1 // pred_check
      _
    $region19: #{ae_relu_forward.1} parent=1 // pred_check_branch
      %55 = sbr.rel (0) target = $region21
    $region20: #{ae_relu_forward.1} parent=1 // pred_region
      %s57 = ssub.s32 1024, 1024
      %58 = vsyncadd [#allocation8], %s57
      %s59 = sshll.u32 [#allocation7], 4
      %s60 = int_to_ptr.vmem [resolvable:$true] %s59
      %65 = dma.hbm_to_vmem [thread:$0]  %s4, 1024, %s60, [#allocation8], 64, 64, 4
    $region21: #{ae_relu_forward.1} parent=1 // pred_fallthru
      _
    // Predicated region
    $region22: #{ae_relu_forward.1} parent=1 // pred_check
      _
    $region23: #{ae_relu_forward.1} parent=1 // pred_check_branch
      %67 = sbr.rel (0) target = $region25
    $region24: #{ae_relu_forward.1} parent=1 // pred_region
      %s69 = ssub.s32 3072, 3072
      %70 = vsyncadd [#allocation8], %s69
      %s71 = sshll.u32 [#allocation9], 4
      %s72 = int_to_ptr.vmem [resolvable:$true] %s71
      %77 = dma.hbm_to_vmem [thread:$0]  %s5, 3072, %s72, [#allocation8], 192, 192, 12
    $region25: #{ae_relu_forward.1} parent=1 // pred_fallthru
      _
    // Predicated region
    $region26: #{ae_relu_forward.1} parent=1 // pred_check
      _
    $region27: #{ae_relu_forward.1} parent=1 // pred_check_branch
      %79 = sbr.rel (0) target = $region29
    $region28: #{ae_relu_forward.1} parent=1 // pred_region
      %s81 = ssub.s32 6144, 6144
      %82 = vsyncadd [#allocation11], %s81
      %s83 = sshll.u32 [#allocation10], 4
      %s84 = int_to_ptr.vmem [resolvable:$true] %s83
      %89 = dma.hbm_to_vmem [thread:$0]  %s6, 6144, %s84, [#allocation11], 128, 128, 8
    $region29: #{ae_relu_forward.1} parent=1 // pred_fallthru
      _
    // Predicated region
    $region30: #{ae_relu_forward.1} parent=1 // pred_check
      _
    $region31: #{ae_relu_forward.1} parent=1 // pred_check_branch
      %91 = sbr.rel (0) target = $region33
    $region32: #{ae_relu_forward.1} parent=1 // pred_region
      %92 = dma.done [#allocation3], 6144
    $region33: #{ae_relu_forward.1} parent=1 // pred_fallthru
      _
    // Predicated region
    $region34: #{ae_relu_forward.1} parent=1 // pred_check
      _
    $region35: #{ae_relu_forward.1} parent=1 // pred_check_branch
      %94 = sbr.rel (0) target = $region37
    $region36: #{ae_relu_forward.1} parent=1 // pred_region
      %95 = dma.done [#allocation5], 3072
    $region37: #{ae_relu_forward.1} parent=1 // pred_fallthru
      _
    // Predicated region
    $region38: #{ae_relu_forward.1} parent=1 // pred_check
      _
    $region39: #{ae_relu_forward.1} parent=1 // pred_check_branch
      %97 = sbr.rel (0) target = $region41
    $region40: #{ae_relu_forward.1} parent=1 // pred_region
      %98 = dma.done [#allocation5], 1024
    $region41: #{ae_relu_forward.1} parent=1 // pred_fallthru
      _
    // Predicated region
    $region42: #{ae_relu_forward.1} parent=1 // pred_check
      _
    $region43: #{ae_relu_forward.1} parent=1 // pred_check_branch
      %100 = sbr.rel (0) target = $region45
    $region44: #{ae_relu_forward.1} parent=1 // pred_region
      %101 = dma.done [#allocation8], 1024
    $region45: #{ae_relu_forward.1} parent=1 // pred_fallthru
      _
    // Predicated region
    $region46: #{ae_relu_forward.1} parent=1 // pred_check
      _
    $region47: #{ae_relu_forward.1} parent=1 // pred_check_branch
      %103 = sbr.rel (0) target = $region49
    $region48: #{ae_relu_forward.1} parent=1 // pred_region
      %104 = dma.done [#allocation8], 3072
    $region49: #{ae_relu_forward.1} parent=1 // pred_fallthru
      _
    // Predicated region
    $region50: #{ae_relu_forward.1} parent=1 // pred_check
      _
    $region51: #{ae_relu_forward.1} parent=1 // pred_check_branch
      %106 = sbr.rel (0) target = $region53
    $region52: #{ae_relu_forward.1} parent=1 // pred_region
      %107 = dma.done [#allocation11], 6144
    $region53: #{ae_relu_forward.1} parent=1 // pred_fallthru
      _
    %v109 = vld [vmem:[%s0] sm:$0xff]
    %v110 = vld [vmem:[%s0 + $0x8] sm:$0xff]
    %v111 = vld [vmem:[%s0 + $0x10] sm:$0xff]
    %v112 = vld [vmem:[%s0 + $0x18] sm:$0xff]
    %v113 = vpack.c.bf16 %v111, %v109
    %v114 = vpack.c.bf16 %v112, %v110
    %v115 = vld [vmem:[#allocation2] sm:$0xff]
    %v116 = vld [vmem:[#allocation2 + $0x8] sm:$0xf]
    %v117 = vld [vmem:[#allocation2 + $0xc] sm:$0xff]
    %v118 = vld [vmem:[#allocation2 + $0x14] sm:$0xf]
    %v119 = vld [vmem:[#allocation2 + $0x18] sm:$0xff]
    %v120 = vld [vmem:[#allocation2 + $0x20] sm:$0xf]
    %v121 = vld [vmem:[#allocation2 + $0x24] sm:$0xff]
    %v122 = vld [vmem:[#allocation2 + $0x2c] sm:$0xf]
    %v123 = vld [vmem:[#allocation2 + $0x30] sm:$0xff]
    %v124 = vld [vmem:[#allocation2 + $0x38] sm:$0xf]
    %v125 = vld [vmem:[#allocation2 + $0x3c] sm:$0xff]
    %v126 = vld [vmem:[#allocation2 + $0x44] sm:$0xf]
    %v127 = vld [vmem:[#allocation2 + $0x48] sm:$0xff]
    %v128 = vld [vmem:[#allocation2 + $0x50] sm:$0xf]
    %v129 = vld [vmem:[#allocation2 + $0x54] sm:$0xff]
    %v130 = vld [vmem:[#allocation2 + $0x5c] sm:$0xf]
    %v131 = vld [vmem:[#allocation2 + $0x60] sm:$0xff]
    %v132 = vld [vmem:[#allocation2 + $0x68] sm:$0xf]
    %v133 = vld [vmem:[#allocation2 + $0x6c] sm:$0xff]
    %v134 = vld [vmem:[#allocation2 + $0x74] sm:$0xf]
    %v135 = vld [vmem:[#allocation2 + $0x78] sm:$0xff]
    %v136 = vld [vmem:[#allocation2 + $0x80] sm:$0xf]
    %v137 = vld [vmem:[#allocation2 + $0x84] sm:$0xff]
    %v138 = vld [vmem:[#allocation2 + $0x8c] sm:$0xf]
    %v139 = vld [vmem:[#allocation2 + $0x90] sm:$0xff]
    %v140 = vld [vmem:[#allocation2 + $0x98] sm:$0xf]
    %v141 = vld [vmem:[#allocation2 + $0x9c] sm:$0xff]
    %v142 = vld [vmem:[#allocation2 + $0xa4] sm:$0xf]
    %v143 = vld [vmem:[#allocation2 + $0xa8] sm:$0xff]
    %v144 = vld [vmem:[#allocation2 + $0xb0] sm:$0xf]
    %v145 = vld [vmem:[#allocation2 + $0xb4] sm:$0xff]
    %v146 = vld [vmem:[#allocation2 + $0xbc] sm:$0xf]
    %v147 = vld [vmem:[#allocation2 + $0xc0] sm:$0xff]
    %v148 = vld [vmem:[#allocation2 + $0xc8] sm:$0xf]
    %v149 = vld [vmem:[#allocation2 + $0xcc] sm:$0xff]
    %v150 = vld [vmem:[#allocation2 + $0xd4] sm:$0xf]
    %v151 = vld [vmem:[#allocation2 + $0xd8] sm:$0xff]
    %v152 = vld [vmem:[#allocation2 + $0xe0] sm:$0xf]
    %v153 = vld [vmem:[#allocation2 + $0xe4] sm:$0xff]
    %v154 = vld [vmem:[#allocation2 + $0xec] sm:$0xf]
    %v155 = vld [vmem:[#allocation2 + $0xf0] sm:$0xff]
    %v156 = vld [vmem:[#allocation2 + $0xf8] sm:$0xf]
    %v157 = vld [vmem:[#allocation2 + $0xfc] sm:$0xff]
    %v158 = vld [vmem:[#allocation2 + $0x104] sm:$0xf]
    %v159 = vld [vmem:[#allocation2 + $0x108] sm:$0xff]
    %v160 = vld [vmem:[#allocation2 + $0x110] sm:$0xf]
    %v161 = vld [vmem:[#allocation2 + $0x114] sm:$0xff]
    %v162 = vld [vmem:[#allocation2 + $0x11c] sm:$0xf]
    %v163 = vld [vmem:[#allocation2 + $0x120] sm:$0xff]
    %v164 = vld [vmem:[#allocation2 + $0x128] sm:$0xf]
    %v165 = vld [vmem:[#allocation2 + $0x12c] sm:$0xff]
    %v166 = vld [vmem:[#allocation2 + $0x134] sm:$0xf]
    %v167 = vld [vmem:[#allocation2 + $0x138] sm:$0xff]
    %v168 = vld [vmem:[#allocation2 + $0x140] sm:$0xf]
    %v169 = vld [vmem:[#allocation2 + $0x144] sm:$0xff]
    %v170 = vld [vmem:[#allocation2 + $0x14c] sm:$0xf]
    %v171 = vld [vmem:[#allocation2 + $0x150] sm:$0xff]
    %v172 = vld [vmem:[#allocation2 + $0x158] sm:$0xf]
    %v173 = vld [vmem:[#allocation2 + $0x15c] sm:$0xff]
    %v174 = vld [vmem:[#allocation2 + $0x164] sm:$0xf]
    %v175 = vld [vmem:[#allocation2 + $0x168] sm:$0xff]
    %v176 = vld [vmem:[#allocation2 + $0x170] sm:$0xf]
    %v177 = vld [vmem:[#allocation2 + $0x174] sm:$0xff]
    %v178 = vld [vmem:[#allocation2 + $0x17c] sm:$0xf]
    %v243 = vunpack.c.l.b16 %v115
    %v244 = vunpack.c.h.b16 %v115
    %v245 = vunpack.c.l.b16 %v116
    %v246 = vunpack.c.l.b16 %v117
    %v247 = vunpack.c.h.b16 %v117
    %v248 = vunpack.c.l.b16 %v118
    %v249 = vunpack.c.l.b16 %v119
    %v250 = vunpack.c.h.b16 %v119
    %v251 = vunpack.c.l.b16 %v120
    %v252 = vunpack.c.l.b16 %v121
    %v253 = vunpack.c.h.b16 %v121
    %v254 = vunpack.c.l.b16 %v122
    %v255 = vunpack.c.l.b16 %v123
    %v256 = vunpack.c.h.b16 %v123
    %v257 = vunpack.c.l.b16 %v124
    %v258 = vunpack.c.l.b16 %v125
    %v259 = vunpack.c.h.b16 %v125
    %v260 = vunpack.c.l.b16 %v126
    %v261 = vunpack.c.l.b16 %v127
    %v262 = vunpack.c.h.b16 %v127
    %v263 = vunpack.c.l.b16 %v128
    %v264 = vunpack.c.l.b16 %v129
    %v265 = vunpack.c.h.b16 %v129
    %v266 = vunpack.c.l.b16 %v130
    %v267 = vunpack.c.l.b16 %v131
    %v268 = vunpack.c.h.b16 %v131
    %v269 = vunpack.c.l.b16 %v132
    %v270 = vunpack.c.l.b16 %v133
    %v271 = vunpack.c.h.b16 %v133
    %v272 = vunpack.c.l.b16 %v134
    %v273 = vunpack.c.l.b16 %v135
    %v274 = vunpack.c.h.b16 %v135
    %v275 = vunpack.c.l.b16 %v136
    %v276 = vunpack.c.l.b16 %v137
    %v277 = vunpack.c.h.b16 %v137
    %v278 = vunpack.c.l.b16 %v138
    %v279 = vunpack.c.l.b16 %v139
    %v280 = vunpack.c.h.b16 %v139
    %v281 = vunpack.c.l.b16 %v140
    %v282 = vunpack.c.l.b16 %v141
    %v283 = vunpack.c.h.b16 %v141
    %v284 = vunpack.c.l.b16 %v142
    %v285 = vunpack.c.l.b16 %v143
    %v286 = vunpack.c.h.b16 %v143
    %v287 = vunpack.c.l.b16 %v144
    %v288 = vunpack.c.l.b16 %v145
    %v289 = vunpack.c.h.b16 %v145
    %v290 = vunpack.c.l.b16 %v146
    %v291 = vunpack.c.l.b16 %v147
    %v292 = vunpack.c.h.b16 %v147
    %v293 = vunpack.c.l.b16 %v148
    %v294 = vunpack.c.l.b16 %v149
    %v295 = vunpack.c.h.b16 %v149
    %v296 = vunpack.c.l.b16 %v150
    %v297 = vunpack.c.l.b16 %v151
    %v298 = vunpack.c.h.b16 %v151
    %v299 = vunpack.c.l.b16 %v152
    %v300 = vunpack.c.l.b16 %v153
    %v301 = vunpack.c.h.b16 %v153
    %v302 = vunpack.c.l.b16 %v154
    %v303 = vunpack.c.l.b16 %v155
    %v304 = vunpack.c.h.b16 %v155
    %v305 = vunpack.c.l.b16 %v156
    %v306 = vunpack.c.l.b16 %v157
    %v307 = vunpack.c.h.b16 %v157
    %v308 = vunpack.c.l.b16 %v158
    %v309 = vunpack.c.l.b16 %v159
    %v310 = vunpack.c.h.b16 %v159
    %v311 = vunpack.c.l.b16 %v160
    %v312 = vunpack.c.l.b16 %v161
    %v313 = vunpack.c.h.b16 %v161
    %v314 = vunpack.c.l.b16 %v162
    %v315 = vunpack.c.l.b16 %v163
    %v316 = vunpack.c.h.b16 %v163
    %v317 = vunpack.c.l.b16 %v164
    %v318 = vunpack.c.l.b16 %v165
    %v319 = vunpack.c.h.b16 %v165
    %v320 = vunpack.c.l.b16 %v166
    %v321 = vunpack.c.l.b16 %v167
    %v322 = vunpack.c.h.b16 %v167
    %v323 = vunpack.c.l.b16 %v168
    %v324 = vunpack.c.l.b16 %v169
    %v325 = vunpack.c.h.b16 %v169
    %v326 = vunpack.c.l.b16 %v170
    %v327 = vunpack.c.l.b16 %v171
    %v328 = vunpack.c.h.b16 %v171
    %v329 = vunpack.c.l.b16 %v172
    %v330 = vunpack.c.l.b16 %v173
    %v331 = vunpack.c.h.b16 %v173
    %v332 = vunpack.c.l.b16 %v174
    %v333 = vunpack.c.l.b16 %v175
    %v334 = vunpack.c.h.b16 %v175
    %v335 = vunpack.c.l.b16 %v176
    %v336 = vunpack.c.l.b16 %v177
    %v337 = vunpack.c.h.b16 %v177
    %v338 = vunpack.c.l.b16 %v178
    %v339 = vpack.c.b16 %v246, %v243
    %v340 = vpack.c.b16 %v247, %v244
    %v341 = vpack.c.b16 %v248, %v245
    %v342 = vpack.c.b16 %v252, %v249
    %v343 = vpack.c.b16 %v253, %v250
    %v344 = vpack.c.b16 %v254, %v251
    %v345 = vpack.c.b16 %v258, %v255
    %v346 = vpack.c.b16 %v259, %v256
    %v347 = vpack.c.b16 %v260, %v257
    %v348 = vpack.c.b16 %v264, %v261
    %v349 = vpack.c.b16 %v265, %v262
    %v350 = vpack.c.b16 %v266, %v263
    %v351 = vpack.c.b16 %v270, %v267
    %v352 = vpack.c.b16 %v271, %v268
    %v353 = vpack.c.b16 %v272, %v269
    %v354 = vpack.c.b16 %v276, %v273
    %v355 = vpack.c.b16 %v277, %v274
    %v356 = vpack.c.b16 %v278, %v275
    %v357 = vpack.c.b16 %v282, %v279
    %v358 = vpack.c.b16 %v283, %v280
    %v359 = vpack.c.b16 %v284, %v281
    %v360 = vpack.c.b16 %v288, %v285
    %v361 = vpack.c.b16 %v289, %v286
    %v362 = vpack.c.b16 %v290, %v287
    %v363 = vpack.c.b16 %v294, %v291
    %v364 = vpack.c.b16 %v295, %v292
    %v365 = vpack.c.b16 %v296, %v293
    %v366 = vpack.c.b16 %v300, %v297
    %v367 = vpack.c.b16 %v301, %v298
    %v368 = vpack.c.b16 %v302, %v299
    %v369 = vpack.c.b16 %v306, %v303
    %v370 = vpack.c.b16 %v307, %v304
    %v371 = vpack.c.b16 %v308, %v305
    %v372 = vpack.c.b16 %v312, %v309
    %v373 = vpack.c.b16 %v313, %v310
    %v374 = vpack.c.b16 %v314, %v311
    %v375 = vpack.c.b16 %v318, %v315
    %v376 = vpack.c.b16 %v319, %v316
    %v377 = vpack.c.b16 %v320, %v317
    %v378 = vpack.c.b16 %v324, %v321
    %v379 = vpack.c.b16 %v325, %v322
    %v380 = vpack.c.b16 %v326, %v323
    %v381 = vpack.c.b16 %v330, %v327
    %v382 = vpack.c.b16 %v331, %v328
    %v383 = vpack.c.b16 %v332, %v329
    %v384 = vpack.c.b16 %v336, %v333
    %v385 = vpack.c.b16 %v337, %v334
    %v386 = vpack.c.b16 %v338, %v335
    %435 = vmatprep.subr.bf16.mxu0 %v361
    %436 = vmatpush1.bf16.msra.mxu0 %v360
    %437 = vmatprep.subr.bf16.mxu0 %v358
    %438 = vmatpush1.bf16.msra.mxu0 %v357
    %439 = vmatprep.subr.bf16.mxu0 %v355
    %440 = vmatpush1.bf16.msra.mxu0 %v354
    %441 = vmatprep.subr.bf16.mxu0 %v352
    %442 = vmatpush1.bf16.msra.mxu0 %v351
    %443 = vmatprep.subr.bf16.mxu0 %v349
    %444 = vmatpush1.bf16.msra.mxu0 %v348
    %445 = vmatprep.subr.bf16.mxu0 %v346
    %446 = vmatpush1.bf16.msra.mxu0 %v345
    %447 = vmatprep.subr.bf16.mxu0 %v343
    %448 = vmatpush1.bf16.msra.mxu0 %v342
    %449 = vmatprep.subr.bf16.mxu0 %v340
    %450 = vmatpush1.bf16.msra.mxu0 %v339
    %451 = vmatprep.subr.bf16.mxu0 %v385
    %452 = vmatpush2.bf16.msra.mxu0 %v384
    %453 = vmatprep.subr.bf16.mxu0 %v382
    %454 = vmatpush2.bf16.msra.mxu0 %v381
    %455 = vmatprep.subr.bf16.mxu0 %v379
    %456 = vmatpush2.bf16.msra.mxu0 %v378
    %457 = vmatprep.subr.bf16.mxu0 %v376
    %458 = vmatpush2.bf16.msra.mxu0 %v375
    %459 = vmatprep.subr.bf16.mxu0 %v373
    %460 = vmatpush2.bf16.msra.mxu0 %v372
    %461 = vmatprep.subr.bf16.mxu0 %v370
    %462 = vmatpush2.bf16.msra.mxu0 %v369
    %463 = vmatprep.subr.bf16.mxu0 %v367
    %464 = vmatpush2.bf16.msra.mxu0 %v366
    %465 = vmatprep.subr.bf16.mxu0 %v364
    %466 = vmatpush2.bf16.msra.mxu0 %v363
    %467 = vmatprep.mubr.bf16.mxu0 %v114
    %468 = vmatmul.mubr.bf16.gmra.mxu0 %v113
    %v469 = vpop.f32.mrf.mxu0
    %v470 = vadd.f32 0.0, %v469
    %v471 = vpop.f32.mrf.mxu0
    %v472 = vadd.f32 0.0, %v471
    %v473 = vpop.f32.mrf.mxu0
    %v474 = vadd.f32 0.0, %v473
    %v475 = vpop.f32.mrf.mxu0
    %v476 = vadd.f32 0.0, %v475
    %477 = vdwg.mxu0
    %478 = vmatprep.subr.bf16.mxu0 0
    %479 = vmatpush1.bf16.msra.mxu0 %v362
    %480 = vmatprep.subr.bf16.mxu0 0
    %481 = vmatpush1.bf16.msra.mxu0 %v359
    %482 = vmatprep.subr.bf16.mxu0 0
    %483 = vmatpush1.bf16.msra.mxu0 %v356
    %484 = vmatprep.subr.bf16.mxu0 0
    %485 = vmatpush1.bf16.msra.mxu0 %v353
    %486 = vmatprep.subr.bf16.mxu0 0
    %487 = vmatpush1.bf16.msra.mxu0 %v350
    %488 = vmatprep.subr.bf16.mxu0 0
    %489 = vmatpush1.bf16.msra.mxu0 %v347
    %490 = vmatprep.subr.bf16.mxu0 0
    %491 = vmatpush1.bf16.msra.mxu0 %v344
    %492 = vmatprep.subr.bf16.mxu0 0
    %493 = vmatpush1.bf16.msra.mxu0 %v341
    %494 = vmatprep.subr.bf16.mxu0 0
    %495 = vmatpush2.bf16.msra.mxu0 %v386
    %496 = vmatprep.subr.bf16.mxu0 0
    %497 = vmatpush2.bf16.msra.mxu0 %v383
    %498 = vmatprep.subr.bf16.mxu0 0
    %499 = vmatpush2.bf16.msra.mxu0 %v380
    %500 = vmatprep.subr.bf16.mxu0 0
    %501 = vmatpush2.bf16.msra.mxu0 %v377
    %502 = vmatprep.subr.bf16.mxu0 0
    %503 = vmatpush2.bf16.msra.mxu0 %v374
    %504 = vmatprep.subr.bf16.mxu0 0
    %505 = vmatpush2.bf16.msra.mxu0 %v371
    %506 = vmatprep.subr.bf16.mxu0 0
    %507 = vmatpush2.bf16.msra.mxu0 %v368
    %508 = vmatprep.subr.bf16.mxu0 0
    %509 = vmatpush2.bf16.msra.mxu0 %v365
    %510 = vmatprep.mubr.bf16.mxu0 %v114
    %511 = vmatmul.mubr.bf16.gmra.mxu0 %v113
    %v512 = vpop.f32.mrf.mxu0
    %v513 = vadd.f32 0.0, %v512
    %v514 = vpop.f32.mrf.mxu0
    %v515 = vpop.f32.mrf.mxu0
    %v516 = vadd.f32 0.0, %v515
    %v517 = vpop.f32.mrf.mxu0
    %518 = vdwg.mxu0
    %v519 = vmax.f32 %v470, 0.0
    %v520 = vmax.f32 %v472, 0.0
    %v521 = vmax.f32 %v513, 0.0
    %v522 = vmax.f32 %v474, 0.0
    %v523 = vmax.f32 %v476, 0.0
    %v524 = vmax.f32 %v516, 0.0
    %v525 = vpack.c.bf16 %v522, %v519
    %v526 = vpack.c.bf16 %v523, %v520
    %v527 = vpack.c.bf16 %v524, %v521
    %v528 = vld [vmem:[#allocation4] sm:$0xf]
    %v529 = vld [vmem:[#allocation4 + $0x4] sm:$0xf]
    %v530 = vld [vmem:[#allocation4 + $0x8] sm:$0xf]
    %v531 = vld [vmem:[#allocation4 + $0xc] sm:$0xf]
    %v532 = vld [vmem:[#allocation4 + $0x10] sm:$0xf]
    %v533 = vld [vmem:[#allocation4 + $0x14] sm:$0xf]
    %v534 = vld [vmem:[#allocation4 + $0x18] sm:$0xf]
    %v535 = vld [vmem:[#allocation4 + $0x1c] sm:$0xf]
    %v536 = vld [vmem:[#allocation4 + $0x20] sm:$0xf]
    %v537 = vld [vmem:[#allocation4 + $0x24] sm:$0xf]
    %v538 = vld [vmem:[#allocation4 + $0x28] sm:$0xf]
    %v539 = vld [vmem:[#allocation4 + $0x2c] sm:$0xf]
    %v540 = vld [vmem:[#allocation4 + $0x30] sm:$0xf]
    %v541 = vld [vmem:[#allocation4 + $0x34] sm:$0xf]
    %v542 = vld [vmem:[#allocation4 + $0x38] sm:$0xf]
    %v543 = vld [vmem:[#allocation4 + $0x3c] sm:$0xf]
    %v544 = vld [vmem:[#allocation4 + $0x40] sm:$0xf]
    %v545 = vld [vmem:[#allocation4 + $0x44] sm:$0xf]
    %v546 = vld [vmem:[#allocation4 + $0x48] sm:$0xf]
    %v547 = vld [vmem:[#allocation4 + $0x4c] sm:$0xf]
    %v548 = vld [vmem:[#allocation4 + $0x50] sm:$0xf]
    %v549 = vld [vmem:[#allocation4 + $0x54] sm:$0xf]
    %v550 = vld [vmem:[#allocation4 + $0x58] sm:$0xf]
    %v551 = vld [vmem:[#allocation4 + $0x5c] sm:$0xf]
    %v552 = vld [vmem:[#allocation4 + $0x60] sm:$0xf]
    %v553 = vld [vmem:[#allocation4 + $0x64] sm:$0xf]
    %v554 = vld [vmem:[#allocation4 + $0x68] sm:$0xf]
    %v555 = vld [vmem:[#allocation4 + $0x6c] sm:$0xf]
    %v556 = vld [vmem:[#allocation4 + $0x70] sm:$0xf]
    %v557 = vld [vmem:[#allocation4 + $0x74] sm:$0xf]
    %v558 = vld [vmem:[#allocation4 + $0x78] sm:$0xf]
    %v559 = vld [vmem:[#allocation4 + $0x7c] sm:$0xf]
    %v560 = vld [vmem:[#allocation4 + $0x80] sm:$0xf]
    %v561 = vld [vmem:[#allocation4 + $0x84] sm:$0xf]
    %v562 = vld [vmem:[#allocation4 + $0x88] sm:$0xf]
    %v563 = vld [vmem:[#allocation4 + $0x8c] sm:$0xf]
    %v564 = vld [vmem:[#allocation4 + $0x90] sm:$0xf]
    %v565 = vld [vmem:[#allocation4 + $0x94] sm:$0xf]
    %v566 = vld [vmem:[#allocation4 + $0x98] sm:$0xf]
    %v567 = vld [vmem:[#allocation4 + $0x9c] sm:$0xf]
    %v568 = vld [vmem:[#allocation4 + $0xa0] sm:$0xf]
    %v569 = vld [vmem:[#allocation4 + $0xa4] sm:$0xf]
    %v570 = vld [vmem:[#allocation4 + $0xa8] sm:$0xf]
    %v571 = vld [vmem:[#allocation4 + $0xac] sm:$0xf]
    %v572 = vld [vmem:[#allocation4 + $0xb0] sm:$0xf]
    %v573 = vld [vmem:[#allocation4 + $0xb4] sm:$0xf]
    %v574 = vld [vmem:[#allocation4 + $0xb8] sm:$0xf]
    %v575 = vld [vmem:[#allocation4 + $0xbc] sm:$0xf]
    %v624 = vunpack.c.l.b16 %v528
    %v625 = vunpack.c.l.b16 %v529
    %v626 = vunpack.c.l.b16 %v530
    %v627 = vunpack.c.l.b16 %v531
    %v628 = vunpack.c.l.b16 %v532
    %v629 = vunpack.c.l.b16 %v533
    %v630 = vunpack.c.l.b16 %v534
    %v631 = vunpack.c.l.b16 %v535
    %v632 = vunpack.c.l.b16 %v536
    %v633 = vunpack.c.l.b16 %v537
    %v634 = vunpack.c.l.b16 %v538
    %v635 = vunpack.c.l.b16 %v539
    %v636 = vunpack.c.l.b16 %v540
    %v637 = vunpack.c.l.b16 %v541
    %v638 = vunpack.c.l.b16 %v542
    %v639 = vunpack.c.l.b16 %v543
    %v640 = vunpack.c.l.b16 %v544
    %v641 = vunpack.c.l.b16 %v545
    %v642 = vunpack.c.l.b16 %v546
    %v643 = vunpack.c.l.b16 %v547
    %v644 = vunpack.c.l.b16 %v548
    %v645 = vunpack.c.l.b16 %v549
    %v646 = vunpack.c.l.b16 %v550
    %v647 = vunpack.c.l.b16 %v551
    %v648 = vunpack.c.l.b16 %v552
    %v649 = vunpack.c.l.b16 %v553
    %v650 = vunpack.c.l.b16 %v554
    %v651 = vunpack.c.l.b16 %v555
    %v652 = vunpack.c.l.b16 %v556
    %v653 = vunpack.c.l.b16 %v557
    %v654 = vunpack.c.l.b16 %v558
    %v655 = vunpack.c.l.b16 %v559
    %v656 = vunpack.c.l.b16 %v560
    %v657 = vunpack.c.l.b16 %v561
    %v658 = vunpack.c.l.b16 %v562
    %v659 = vunpack.c.l.b16 %v563
    %v660 = vunpack.c.l.b16 %v564
    %v661 = vunpack.c.l.b16 %v565
    %v662 = vunpack.c.l.b16 %v566
    %v663 = vunpack.c.l.b16 %v567
    %v664 = vunpack.c.l.b16 %v568
    %v665 = vunpack.c.l.b16 %v569
    %v666 = vunpack.c.l.b16 %v570
    %v667 = vunpack.c.l.b16 %v571
    %v668 = vunpack.c.l.b16 %v572
    %v669 = vunpack.c.l.b16 %v573
    %v670 = vunpack.c.l.b16 %v574
    %v671 = vunpack.c.l.b16 %v575
    %v672 = vpack.c.b16 %v625, %v624
    %v673 = vpack.c.b16 %v627, %v626
    %v674 = vpack.c.b16 %v629, %v628
    %v675 = vpack.c.b16 %v631, %v630
    %v676 = vpack.c.b16 %v633, %v632
    %v677 = vpack.c.b16 %v635, %v634
    %v678 = vpack.c.b16 %v637, %v636
    %v679 = vpack.c.b16 %v639, %v638
    %v680 = vpack.c.b16 %v641, %v640
    %v681 = vpack.c.b16 %v643, %v642
    %v682 = vpack.c.b16 %v645, %v644
    %v683 = vpack.c.b16 %v647, %v646
    %v684 = vpack.c.b16 %v649, %v648
    %v685 = vpack.c.b16 %v651, %v650
    %v686 = vpack.c.b16 %v653, %v652
    %v687 = vpack.c.b16 %v655, %v654
    %v688 = vpack.c.b16 %v657, %v656
    %v689 = vpack.c.b16 %v659, %v658
    %v690 = vpack.c.b16 %v661, %v660
    %v691 = vpack.c.b16 %v663, %v662
    %v692 = vpack.c.b16 %v665, %v664
    %v693 = vpack.c.b16 %v667, %v666
    %v694 = vpack.c.b16 %v669, %v668
    %v695 = vpack.c.b16 %v671, %v670
    %720 = vmatprep.subr.bf16.mxu0 0
    %721 = vmatpush1.bf16.msra.mxu0 %v679
    %722 = vmatprep.subr.bf16.mxu0 0
    %723 = vmatpush1.bf16.msra.mxu0 %v678
    %724 = vmatprep.subr.bf16.mxu0 0
    %725 = vmatpush1.bf16.msra.mxu0 %v677
    %726 = vmatprep.subr.bf16.mxu0 0
    %727 = vmatpush1.bf16.msra.mxu0 %v676
    %728 = vmatprep.subr.bf16.mxu0 0
    %729 = vmatpush1.bf16.msra.mxu0 %v675
    %730 = vmatprep.subr.bf16.mxu0 0
    %731 = vmatpush1.bf16.msra.mxu0 %v674
    %732 = vmatprep.subr.bf16.mxu0 0
    %733 = vmatpush1.bf16.msra.mxu0 %v673
    %734 = vmatprep.subr.bf16.mxu0 0
    %735 = vmatpush1.bf16.msra.mxu0 %v672
    %736 = vmatprep.subr.bf16.mxu0 0
    %737 = vmatpush2.bf16.msra.mxu0 %v687
    %738 = vmatprep.subr.bf16.mxu0 0
    %739 = vmatpush2.bf16.msra.mxu0 %v686
    %740 = vmatprep.subr.bf16.mxu0 0
    %741 = vmatpush2.bf16.msra.mxu0 %v685
    %742 = vmatprep.subr.bf16.mxu0 0
    %743 = vmatpush2.bf16.msra.mxu0 %v684
    %744 = vmatprep.subr.bf16.mxu0 0
    %745 = vmatpush2.bf16.msra.mxu0 %v683
    %746 = vmatprep.subr.bf16.mxu0 0
    %747 = vmatpush2.bf16.msra.mxu0 %v682
    %748 = vmatprep.subr.bf16.mxu0 0
    %749 = vmatpush2.bf16.msra.mxu0 %v681
    %750 = vmatprep.subr.bf16.mxu0 0
    %751 = vmatpush2.bf16.msra.mxu0 %v680
    %752 = vmatprep.mubr.bf16.mxu0 %v526
    %753 = vmatmul.mubr.bf16.gmra.mxu0 %v525
    %v754 = vpop.f32.mrf.mxu0
    %v755 = vadd.f32 0.0, %v754
    %v756 = vpop.f32.mrf.mxu0
    %v757 = vpop.f32.mrf.mxu0
    %v758 = vadd.f32 0.0, %v757
    %v759 = vpop.f32.mrf.mxu0
    %760 = vdwg.mxu0
    %761 = vmatprep.subr.bf16.mxu0 0
    %762 = vmatpush1.bf16.msra.mxu0 %v695
    %763 = vmatprep.subr.bf16.mxu0 0
    %764 = vmatpush1.bf16.msra.mxu0 %v694
    %765 = vmatprep.subr.bf16.mxu0 0
    %766 = vmatpush1.bf16.msra.mxu0 %v693
    %767 = vmatprep.subr.bf16.mxu0 0
    %768 = vmatpush1.bf16.msra.mxu0 %v692
    %769 = vmatprep.subr.bf16.mxu0 0
    %770 = vmatpush1.bf16.msra.mxu0 %v691
    %771 = vmatprep.subr.bf16.mxu0 0
    %772 = vmatpush1.bf16.msra.mxu0 %v690
    %773 = vmatprep.subr.bf16.mxu0 0
    %774 = vmatpush1.bf16.msra.mxu0 %v689
    %775 = vmatprep.subr.bf16.mxu0 0
    %776 = vmatpush1.bf16.msra.mxu0 %v688
    %777 = vmatprep.subr.bf16.mxu0 0
    %778 = vmatpush2.bf16.msra.mxu0 0
    %779 = vmatprep.subr.bf16.mxu0 0
    %780 = vmatpush2.bf16.msra.mxu0 0
    %781 = vmatprep.subr.bf16.mxu0 0
    %782 = vmatpush2.bf16.msra.mxu0 0
    %783 = vmatprep.subr.bf16.mxu0 0
    %784 = vmatpush2.bf16.msra.mxu0 0
    %785 = vmatprep.subr.bf16.mxu0 0
    %786 = vmatpush2.bf16.msra.mxu0 0
    %787 = vmatprep.subr.bf16.mxu0 0
    %788 = vmatpush2.bf16.msra.mxu0 0
    %789 = vmatprep.subr.bf16.mxu0 0
    %790 = vmatpush2.bf16.msra.mxu0 0
    %791 = vmatprep.subr.bf16.mxu0 0
    %792 = vmatpush2.bf16.msra.mxu0 0
    %793 = vmatprep.mubr.bf16.mxu0 0
    %794 = vmatmul.mubr.bf16.gmra.mxu0 %v527
    %v795 = vpop.f32.mrf.mxu0
    %v796 = vadd.f32 %v755, %v795
    %v797 = vpop.f32.mrf.mxu0
    %v798 = vpop.f32.mrf.mxu0
    %v799 = vadd.f32 %v758, %v798
    %v800 = vpop.f32.mrf.mxu0
    %801 = vdwg.mxu0
    %v802 = vmax.f32 %v796, 0.0
    %v803 = vmax.f32 %v799, 0.0
    %v804 = vpack.c.bf16 %v803, %v802
    %v805 = vld [vmem:[#allocation6] sm:$0xf]
    %v806 = vld [vmem:[#allocation6 + $0x4] sm:$0xf]
    %v807 = vld [vmem:[#allocation6 + $0x8] sm:$0xf]
    %v808 = vld [vmem:[#allocation6 + $0xc] sm:$0xf]
    %v809 = vld [vmem:[#allocation6 + $0x10] sm:$0xf]
    %v810 = vld [vmem:[#allocation6 + $0x14] sm:$0xf]
    %v811 = vld [vmem:[#allocation6 + $0x18] sm:$0xf]
    %v812 = vld [vmem:[#allocation6 + $0x1c] sm:$0xf]
    %v813 = vld [vmem:[#allocation6 + $0x20] sm:$0xf]
    %v814 = vld [vmem:[#allocation6 + $0x24] sm:$0xf]
    %v815 = vld [vmem:[#allocation6 + $0x28] sm:$0xf]
    %v816 = vld [vmem:[#allocation6 + $0x2c] sm:$0xf]
    %v817 = vld [vmem:[#allocation6 + $0x30] sm:$0xf]
    %v818 = vld [vmem:[#allocation6 + $0x34] sm:$0xf]
    %v819 = vld [vmem:[#allocation6 + $0x38] sm:$0xf]
    %v820 = vld [vmem:[#allocation6 + $0x3c] sm:$0xf]
    %v837 = vunpack.c.l.b16 %v805
    %v838 = vunpack.c.l.b16 %v806
    %v839 = vunpack.c.l.b16 %v807
    %v840 = vunpack.c.l.b16 %v808
    %v841 = vunpack.c.l.b16 %v809
    %v842 = vunpack.c.l.b16 %v810
    %v843 = vunpack.c.l.b16 %v811
    %v844 = vunpack.c.l.b16 %v812
    %v845 = vunpack.c.l.b16 %v813
    %v846 = vunpack.c.l.b16 %v814
    %v847 = vunpack.c.l.b16 %v815
    %v848 = vunpack.c.l.b16 %v816
    %v849 = vunpack.c.l.b16 %v817
    %v850 = vunpack.c.l.b16 %v818
    %v851 = vunpack.c.l.b16 %v819
    %v852 = vunpack.c.l.b16 %v820
    %v853 = vpack.c.b16 %v838, %v837
    %v854 = vpack.c.b16 %v840, %v839
    %v855 = vpack.c.b16 %v842, %v841
    %v856 = vpack.c.b16 %v844, %v843
    %v857 = vpack.c.b16 %v846, %v845
    %v858 = vpack.c.b16 %v848, %v847
    %v859 = vpack.c.b16 %v850, %v849
    %v860 = vpack.c.b16 %v852, %v851
    %869 = vmatprep.subr.bf16.mxu0 0
    %870 = vmatpush1.bf16.msra.mxu0 %v860
    %871 = vmatprep.subr.bf16.mxu0 0
    %872 = vmatpush1.bf16.msra.mxu0 %v859
    %873 = vmatprep.subr.bf16.mxu0 0
    %874 = vmatpush1.bf16.msra.mxu0 %v858
    %875 = vmatprep.subr.bf16.mxu0 0
    %876 = vmatpush1.bf16.msra.mxu0 %v857
    %877 = vmatprep.subr.bf16.mxu0 0
    %878 = vmatpush1.bf16.msra.mxu0 %v856
    %879 = vmatprep.subr.bf16.mxu0 0
    %880 = vmatpush1.bf16.msra.mxu0 %v855
    %881 = vmatprep.subr.bf16.mxu0 0
    %882 = vmatpush1.bf16.msra.mxu0 %v854
    %883 = vmatprep.subr.bf16.mxu0 0
    %884 = vmatpush1.bf16.msra.mxu0 %v853
    %885 = vmatprep.subr.bf16.mxu0 0
    %886 = vmatpush2.bf16.msra.mxu0 0
    %887 = vmatprep.subr.bf16.mxu0 0
    %888 = vmatpush2.bf16.msra.mxu0 0
    %889 = vmatprep.subr.bf16.mxu0 0
    %890 = vmatpush2.bf16.msra.mxu0 0
    %891 = vmatprep.subr.bf16.mxu0 0
    %892 = vmatpush2.bf16.msra.mxu0 0
    %893 = vmatprep.subr.bf16.mxu0 0
    %894 = vmatpush2.bf16.msra.mxu0 0
    %895 = vmatprep.subr.bf16.mxu0 0
    %896 = vmatpush2.bf16.msra.mxu0 0
    %897 = vmatprep.subr.bf16.mxu0 0
    %898 = vmatpush2.bf16.msra.mxu0 0
    %899 = vmatprep.subr.bf16.mxu0 0
    %900 = vmatpush2.bf16.msra.mxu0 0
    %901 = vmatprep.mubr.bf16.mxu0 0
    %902 = vmatmul.mubr.bf16.gmra.mxu0 %v804
    %v903 = vpop.f32.mrf.mxu0
    %v904 = vadd.f32 0.0, %v903
    %v905 = vpop.f32.mrf.mxu0
    %v906 = vpop.f32.mrf.mxu0
    %v907 = vadd.f32 0.0, %v906
    %v908 = vpop.f32.mrf.mxu0
    %909 = vdwg.mxu0
    %v910 = vmax.f32 %v904, 0.0
    %v911 = vmax.f32 %v907, 0.0
    %v912 = vpack.c.bf16 %v911, %v910
    %v913 = vld [vmem:[#allocation7] sm:$0xf]
    %v914 = vld [vmem:[#allocation7 + $0x4] sm:$0xf]
    %v915 = vld [vmem:[#allocation7 + $0x8] sm:$0xf]
    %v916 = vld [vmem:[#allocation7 + $0xc] sm:$0xf]
    %v917 = vld [vmem:[#allocation7 + $0x10] sm:$0xf]
    %v918 = vld [vmem:[#allocation7 + $0x14] sm:$0xf]
    %v919 = vld [vmem:[#allocation7 + $0x18] sm:$0xf]
    %v920 = vld [vmem:[#allocation7 + $0x1c] sm:$0xf]
    %v921 = vld [vmem:[#allocation7 + $0x20] sm:$0xf]
    %v922 = vld [vmem:[#allocation7 + $0x24] sm:$0xf]
    %v923 = vld [vmem:[#allocation7 + $0x28] sm:$0xf]
    %v924 = vld [vmem:[#allocation7 + $0x2c] sm:$0xf]
    %v925 = vld [vmem:[#allocation7 + $0x30] sm:$0xf]
    %v926 = vld [vmem:[#allocation7 + $0x34] sm:$0xf]
    %v927 = vld [vmem:[#allocation7 + $0x38] sm:$0xf]
    %v928 = vld [vmem:[#allocation7 + $0x3c] sm:$0xf]
    %v945 = vunpack.c.l.b16 %v913
    %v946 = vunpack.c.l.b16 %v914
    %v947 = vunpack.c.l.b16 %v915
    %v948 = vunpack.c.l.b16 %v916
    %v949 = vunpack.c.l.b16 %v917
    %v950 = vunpack.c.l.b16 %v918
    %v951 = vunpack.c.l.b16 %v919
    %v952 = vunpack.c.l.b16 %v920
    %v953 = vunpack.c.l.b16 %v921
    %v954 = vunpack.c.l.b16 %v922
    %v955 = vunpack.c.l.b16 %v923
    %v956 = vunpack.c.l.b16 %v924
    %v957 = vunpack.c.l.b16 %v925
    %v958 = vunpack.c.l.b16 %v926
    %v959 = vunpack.c.l.b16 %v927
    %v960 = vunpack.c.l.b16 %v928
    %v961 = vpack.c.b16 %v946, %v945
    %v962 = vpack.c.b16 %v948, %v947
    %v963 = vpack.c.b16 %v950, %v949
    %v964 = vpack.c.b16 %v952, %v951
    %v965 = vpack.c.b16 %v954, %v953
    %v966 = vpack.c.b16 %v956, %v955
    %v967 = vpack.c.b16 %v958, %v957
    %v968 = vpack.c.b16 %v960, %v959
    %977 = vmatprep.subr.bf16.mxu0 0
    %978 = vmatpush1.bf16.msra.mxu0 %v968
    %979 = vmatprep.subr.bf16.mxu0 0
    %980 = vmatpush1.bf16.msra.mxu0 %v967
    %981 = vmatprep.subr.bf16.mxu0 0
    %982 = vmatpush1.bf16.msra.mxu0 %v966
    %983 = vmatprep.subr.bf16.mxu0 0
    %984 = vmatpush1.bf16.msra.mxu0 %v965
    %985 = vmatprep.subr.bf16.mxu0 0
    %986 = vmatpush1.bf16.msra.mxu0 %v964
    %987 = vmatprep.subr.bf16.mxu0 0
    %988 = vmatpush1.bf16.msra.mxu0 %v963
    %989 = vmatprep.subr.bf16.mxu0 0
    %990 = vmatpush1.bf16.msra.mxu0 %v962
    %991 = vmatprep.subr.bf16.mxu0 0
    %992 = vmatpush1.bf16.msra.mxu0 %v961
    %993 = vmatprep.subr.bf16.mxu0 0
    %994 = vmatpush2.bf16.msra.mxu0 0
    %995 = vmatprep.subr.bf16.mxu0 0
    %996 = vmatpush2.bf16.msra.mxu0 0
    %997 = vmatprep.subr.bf16.mxu0 0
    %998 = vmatpush2.bf16.msra.mxu0 0
    %999 = vmatprep.subr.bf16.mxu0 0
    %1000 = vmatpush2.bf16.msra.mxu0 0
    %1001 = vmatprep.subr.bf16.mxu0 0
    %1002 = vmatpush2.bf16.msra.mxu0 0
    %1003 = vmatprep.subr.bf16.mxu0 0
    %1004 = vmatpush2.bf16.msra.mxu0 0
    %1005 = vmatprep.subr.bf16.mxu0 0
    %1006 = vmatpush2.bf16.msra.mxu0 0
    %1007 = vmatprep.subr.bf16.mxu0 0
    %1008 = vmatpush2.bf16.msra.mxu0 0
    %1009 = vmatprep.mubr.bf16.mxu0 0
    %1010 = vmatmul.mubr.bf16.gmra.mxu0 %v912
    %v1011 = vpop.f32.mrf.mxu0
    %v1012 = vadd.f32 0.0, %v1011
    %v1013 = vpop.f32.mrf.mxu0
    %v1014 = vpop.f32.mrf.mxu0
    %v1015 = vadd.f32 0.0, %v1014
    %v1016 = vpop.f32.mrf.mxu0
    %1017 = vdwg.mxu0
    %v1018 = vmax.f32 %v1012, 0.0
    %v1019 = vmax.f32 %v1015, 0.0
    %v1020 = vpack.c.bf16 %v1019, %v1018
    %v1021 = vld [vmem:[#allocation9] sm:$0xff]
    %v1022 = vld [vmem:[#allocation9 + $0x8] sm:$0xf]
    %v1023 = vld [vmem:[#allocation9 + $0xc] sm:$0xff]
    %v1024 = vld [vmem:[#allocation9 + $0x14] sm:$0xf]
    %v1025 = vld [vmem:[#allocation9 + $0x18] sm:$0xff]
    %v1026 = vld [vmem:[#allocation9 + $0x20] sm:$0xf]
    %v1027 = vld [vmem:[#allocation9 + $0x24] sm:$0xff]
    %v1028 = vld [vmem:[#allocation9 + $0x2c] sm:$0xf]
    %v1029 = vld [vmem:[#allocation9 + $0x30] sm:$0xff]
    %v1030 = vld [vmem:[#allocation9 + $0x38] sm:$0xf]
    %v1031 = vld [vmem:[#allocation9 + $0x3c] sm:$0xff]
    %v1032 = vld [vmem:[#allocation9 + $0x44] sm:$0xf]
    %v1033 = vld [vmem:[#allocation9 + $0x48] sm:$0xff]
    %v1034 = vld [vmem:[#allocation9 + $0x50] sm:$0xf]
    %v1035 = vld [vmem:[#allocation9 + $0x54] sm:$0xff]
    %v1036 = vld [vmem:[#allocation9 + $0x5c] sm:$0xf]
    %v1037 = vld [vmem:[#allocation9 + $0x60] sm:$0xff]
    %v1038 = vld [vmem:[#allocation9 + $0x68] sm:$0xf]
    %v1039 = vld [vmem:[#allocation9 + $0x6c] sm:$0xff]
    %v1040 = vld [vmem:[#allocation9 + $0x74] sm:$0xf]
    %v1041 = vld [vmem:[#allocation9 + $0x78] sm:$0xff]
    %v1042 = vld [vmem:[#allocation9 + $0x80] sm:$0xf]
    %v1043 = vld [vmem:[#allocation9 + $0x84] sm:$0xff]
    %v1044 = vld [vmem:[#allocation9 + $0x8c] sm:$0xf]
    %v1045 = vld [vmem:[#allocation9 + $0x90] sm:$0xff]
    %v1046 = vld [vmem:[#allocation9 + $0x98] sm:$0xf]
    %v1047 = vld [vmem:[#allocation9 + $0x9c] sm:$0xff]
    %v1048 = vld [vmem:[#allocation9 + $0xa4] sm:$0xf]
    %v1049 = vld [vmem:[#allocation9 + $0xa8] sm:$0xff]
    %v1050 = vld [vmem:[#allocation9 + $0xb0] sm:$0xf]
    %v1051 = vld [vmem:[#allocation9 + $0xb4] sm:$0xff]
    %v1052 = vld [vmem:[#allocation9 + $0xbc] sm:$0xf]
    %v1085 = vunpack.c.l.b16 %v1021
    %v1086 = vunpack.c.h.b16 %v1021
    %v1087 = vunpack.c.l.b16 %v1022
    %v1088 = vunpack.c.l.b16 %v1023
    %v1089 = vunpack.c.h.b16 %v1023
    %v1090 = vunpack.c.l.b16 %v1024
    %v1091 = vunpack.c.l.b16 %v1025
    %v1092 = vunpack.c.h.b16 %v1025
    %v1093 = vunpack.c.l.b16 %v1026
    %v1094 = vunpack.c.l.b16 %v1027
    %v1095 = vunpack.c.h.b16 %v1027
    %v1096 = vunpack.c.l.b16 %v1028
    %v1097 = vunpack.c.l.b16 %v1029
    %v1098 = vunpack.c.h.b16 %v1029
    %v1099 = vunpack.c.l.b16 %v1030
    %v1100 = vunpack.c.l.b16 %v1031
    %v1101 = vunpack.c.h.b16 %v1031
    %v1102 = vunpack.c.l.b16 %v1032
    %v1103 = vunpack.c.l.b16 %v1033
    %v1104 = vunpack.c.h.b16 %v1033
    %v1105 = vunpack.c.l.b16 %v1034
    %v1106 = vunpack.c.l.b16 %v1035
    %v1107 = vunpack.c.h.b16 %v1035
    %v1108 = vunpack.c.l.b16 %v1036
    %v1109 = vunpack.c.l.b16 %v1037
    %v1110 = vunpack.c.h.b16 %v1037
    %v1111 = vunpack.c.l.b16 %v1038
    %v1112 = vunpack.c.l.b16 %v1039
    %v1113 = vunpack.c.h.b16 %v1039
    %v1114 = vunpack.c.l.b16 %v1040
    %v1115 = vunpack.c.l.b16 %v1041
    %v1116 = vunpack.c.h.b16 %v1041
    %v1117 = vunpack.c.l.b16 %v1042
    %v1118 = vunpack.c.l.b16 %v1043
    %v1119 = vunpack.c.h.b16 %v1043
    %v1120 = vunpack.c.l.b16 %v1044
    %v1121 = vunpack.c.l.b16 %v1045
    %v1122 = vunpack.c.h.b16 %v1045
    %v1123 = vunpack.c.l.b16 %v1046
    %v1124 = vunpack.c.l.b16 %v1047
    %v1125 = vunpack.c.h.b16 %v1047
    %v1126 = vunpack.c.l.b16 %v1048
    %v1127 = vunpack.c.l.b16 %v1049
    %v1128 = vunpack.c.h.b16 %v1049
    %v1129 = vunpack.c.l.b16 %v1050
    %v1130 = vunpack.c.l.b16 %v1051
    %v1131 = vunpack.c.h.b16 %v1051
    %v1132 = vunpack.c.l.b16 %v1052
    %v1133 = vpack.c.b16 %v1088, %v1085
    %v1134 = vpack.c.b16 %v1089, %v1086
    %v1135 = vpack.c.b16 %v1090, %v1087
    %v1136 = vpack.c.b16 %v1094, %v1091
    %v1137 = vpack.c.b16 %v1095, %v1092
    %v1138 = vpack.c.b16 %v1096, %v1093
    %v1139 = vpack.c.b16 %v1100, %v1097
    %v1140 = vpack.c.b16 %v1101, %v1098
    %v1141 = vpack.c.b16 %v1102, %v1099
    %v1142 = vpack.c.b16 %v1106, %v1103
    %v1143 = vpack.c.b16 %v1107, %v1104
    %v1144 = vpack.c.b16 %v1108, %v1105
    %v1145 = vpack.c.b16 %v1112, %v1109
    %v1146 = vpack.c.b16 %v1113, %v1110
    %v1147 = vpack.c.b16 %v1114, %v1111
    %v1148 = vpack.c.b16 %v1118, %v1115
    %v1149 = vpack.c.b16 %v1119, %v1116
    %v1150 = vpack.c.b16 %v1120, %v1117
    %v1151 = vpack.c.b16 %v1124, %v1121
    %v1152 = vpack.c.b16 %v1125, %v1122
    %v1153 = vpack.c.b16 %v1126, %v1123
    %v1154 = vpack.c.b16 %v1130, %v1127
    %v1155 = vpack.c.b16 %v1131, %v1128
    %v1156 = vpack.c.b16 %v1132, %v1129
    %1181 = vmatprep.subr.bf16.mxu0 %v1155
    %1182 = vmatpush1.bf16.msra.mxu0 %v1154
    %1183 = vmatprep.subr.bf16.mxu0 %v1152
    %1184 = vmatpush1.bf16.msra.mxu0 %v1151
    %1185 = vmatprep.subr.bf16.mxu0 %v1149
    %1186 = vmatpush1.bf16.msra.mxu0 %v1148
    %1187 = vmatprep.subr.bf16.mxu0 %v1146
    %1188 = vmatpush1.bf16.msra.mxu0 %v1145
    %1189 = vmatprep.subr.bf16.mxu0 %v1143
    %1190 = vmatpush1.bf16.msra.mxu0 %v1142
    %1191 = vmatprep.subr.bf16.mxu0 %v1140
    %1192 = vmatpush1.bf16.msra.mxu0 %v1139
    %1193 = vmatprep.subr.bf16.mxu0 %v1137
    %1194 = vmatpush1.bf16.msra.mxu0 %v1136
    %1195 = vmatprep.subr.bf16.mxu0 %v1134
    %1196 = vmatpush1.bf16.msra.mxu0 %v1133
    %1197 = vmatprep.subr.bf16.mxu0 0
    %1198 = vmatpush2.bf16.msra.mxu0 0
    %1199 = vmatprep.subr.bf16.mxu0 0
    %1200 = vmatpush2.bf16.msra.mxu0 0
    %1201 = vmatprep.subr.bf16.mxu0 0
    %1202 = vmatpush2.bf16.msra.mxu0 0
    %1203 = vmatprep.subr.bf16.mxu0 0
    %1204 = vmatpush2.bf16.msra.mxu0 0
    %1205 = vmatprep.subr.bf16.mxu0 0
    %1206 = vmatpush2.bf16.msra.mxu0 0
    %1207 = vmatprep.subr.bf16.mxu0 0
    %1208 = vmatpush2.bf16.msra.mxu0 0
    %1209 = vmatprep.subr.bf16.mxu0 0
    %1210 = vmatpush2.bf16.msra.mxu0 0
    %1211 = vmatprep.subr.bf16.mxu0 0
    %1212 = vmatpush2.bf16.msra.mxu0 0
    %1213 = vmatprep.mubr.bf16.mxu0 0
    %1214 = vmatmul.mubr.bf16.gmra.mxu0 %v1020
    %v1215 = vpop.f32.mrf.mxu0
    %v1216 = vadd.f32 0.0, %v1215
    %v1217 = vpop.f32.mrf.mxu0
    %v1218 = vadd.f32 0.0, %v1217
    %v1219 = vpop.f32.mrf.mxu0
    %v1220 = vadd.f32 0.0, %v1219
    %v1221 = vpop.f32.mrf.mxu0
    %v1222 = vadd.f32 0.0, %v1221
    %1223 = vdwg.mxu0
    %1224 = vmatprep.subr.bf16.mxu0 0
    %1225 = vmatpush1.bf16.msra.mxu0 %v1156
    %1226 = vmatprep.subr.bf16.mxu0 0
    %1227 = vmatpush1.bf16.msra.mxu0 %v1153
    %1228 = vmatprep.subr.bf16.mxu0 0
    %1229 = vmatpush1.bf16.msra.mxu0 %v1150
    %1230 = vmatprep.subr.bf16.mxu0 0
    %1231 = vmatpush1.bf16.msra.mxu0 %v1147
    %1232 = vmatprep.subr.bf16.mxu0 0
    %1233 = vmatpush1.bf16.msra.mxu0 %v1144
    %1234 = vmatprep.subr.bf16.mxu0 0
    %1235 = vmatpush1.bf16.msra.mxu0 %v1141
    %1236 = vmatprep.subr.bf16.mxu0 0
    %1237 = vmatpush1.bf16.msra.mxu0 %v1138
    %1238 = vmatprep.subr.bf16.mxu0 0
    %1239 = vmatpush1.bf16.msra.mxu0 %v1135
    %1240 = vmatprep.subr.bf16.mxu0 0
    %1241 = vmatpush2.bf16.msra.mxu0 0
    %1242 = vmatprep.subr.bf16.mxu0 0
    %1243 = vmatpush2.bf16.msra.mxu0 0
    %1244 = vmatprep.subr.bf16.mxu0 0
    %1245 = vmatpush2.bf16.msra.mxu0 0
    %1246 = vmatprep.subr.bf16.mxu0 0
    %1247 = vmatpush2.bf16.msra.mxu0 0
    %1248 = vmatprep.subr.bf16.mxu0 0
    %1249 = vmatpush2.bf16.msra.mxu0 0
    %1250 = vmatprep.subr.bf16.mxu0 0
    %1251 = vmatpush2.bf16.msra.mxu0 0
    %1252 = vmatprep.subr.bf16.mxu0 0
    %1253 = vmatpush2.bf16.msra.mxu0 0
    %1254 = vmatprep.subr.bf16.mxu0 0
    %1255 = vmatpush2.bf16.msra.mxu0 0
    %1256 = vmatprep.mubr.bf16.mxu0 0
    %1257 = vmatmul.mubr.bf16.gmra.mxu0 %v1020
    %v1258 = vpop.f32.mrf.mxu0
    %v1259 = vadd.f32 0.0, %v1258
    %v1260 = vpop.f32.mrf.mxu0
    %v1261 = vpop.f32.mrf.mxu0
    %v1262 = vadd.f32 0.0, %v1261
    %v1263 = vpop.f32.mrf.mxu0
    %1264 = vdwg.mxu0
    %v1265 = vmax.f32 %v1216, 0.0
    %v1266 = vmax.f32 %v1218, 0.0
    %v1267 = vmax.f32 %v1259, 0.0
    %v1268 = vmax.f32 %v1220, 0.0
    %v1269 = vmax.f32 %v1222, 0.0
    %v1270 = vmax.f32 %v1262, 0.0
    %v1271 = vpack.c.bf16 %v1268, %v1265
    %v1272 = vpack.c.bf16 %v1269, %v1266
    %v1273 = vpack.c.bf16 %v1270, %v1267
    %v1274 = vld [vmem:[#allocation10] sm:$0xff]
    %v1275 = vld [vmem:[#allocation10 + $0x8] sm:$0xff]
    %v1276 = vld [vmem:[#allocation10 + $0x10] sm:$0xff]
    %v1277 = vld [vmem:[#allocation10 + $0x18] sm:$0xff]
    %v1278 = vld [vmem:[#allocation10 + $0x20] sm:$0xff]
    %v1279 = vld [vmem:[#allocation10 + $0x28] sm:$0xff]
    %v1280 = vld [vmem:[#allocation10 + $0x30] sm:$0xff]
    %v1281 = vld [vmem:[#allocation10 + $0x38] sm:$0xff]
    %v1282 = vld [vmem:[#allocation10 + $0x40] sm:$0xff]
    %v1283 = vld [vmem:[#allocation10 + $0x48] sm:$0xff]
    %v1284 = vld [vmem:[#allocation10 + $0x50] sm:$0xff]
    %v1285 = vld [vmem:[#allocation10 + $0x58] sm:$0xff]
    %v1286 = vld [vmem:[#allocation10 + $0x60] sm:$0xff]
    %v1287 = vld [vmem:[#allocation10 + $0x68] sm:$0xff]
    %v1288 = vld [vmem:[#allocation10 + $0x70] sm:$0xff]
    %v1289 = vld [vmem:[#allocation10 + $0x78] sm:$0xff]
    %v1290 = vld [vmem:[#allocation10 + $0x80] sm:$0xff]
    %v1291 = vld [vmem:[#allocation10 + $0x88] sm:$0xff]
    %v1292 = vld [vmem:[#allocation10 + $0x90] sm:$0xff]
    %v1293 = vld [vmem:[#allocation10 + $0x98] sm:$0xff]
    %v1294 = vld [vmem:[#allocation10 + $0xa0] sm:$0xff]
    %v1295 = vld [vmem:[#allocation10 + $0xa8] sm:$0xff]
    %v1296 = vld [vmem:[#allocation10 + $0xb0] sm:$0xff]
    %v1297 = vld [vmem:[#allocation10 + $0xb8] sm:$0xff]
    %v1298 = vld [vmem:[#allocation10 + $0xc0] sm:$0xff]
    %v1299 = vld [vmem:[#allocation10 + $0xc8] sm:$0xff]
    %v1300 = vld [vmem:[#allocation10 + $0xd0] sm:$0xff]
    %v1301 = vld [vmem:[#allocation10 + $0xd8] sm:$0xff]
    %v1302 = vld [vmem:[#allocation10 + $0xe0] sm:$0xff]
    %v1303 = vld [vmem:[#allocation10 + $0xe8] sm:$0xff]
    %v1304 = vld [vmem:[#allocation10 + $0xf0] sm:$0xff]
    %v1305 = vld [vmem:[#allocation10 + $0xf8] sm:$0xff]
    %v1306 = vld [vmem:[#allocation10 + $0x100] sm:$0xff]
    %v1307 = vld [vmem:[#allocation10 + $0x108] sm:$0xff]
    %v1308 = vld [vmem:[#allocation10 + $0x110] sm:$0xff]
    %v1309 = vld [vmem:[#allocation10 + $0x118] sm:$0xff]
    %v1310 = vld [vmem:[#allocation10 + $0x120] sm:$0xff]
    %v1311 = vld [vmem:[#allocation10 + $0x128] sm:$0xff]
    %v1312 = vld [vmem:[#allocation10 + $0x130] sm:$0xff]
    %v1313 = vld [vmem:[#allocation10 + $0x138] sm:$0xff]
    %v1314 = vld [vmem:[#allocation10 + $0x140] sm:$0xff]
    %v1315 = vld [vmem:[#allocation10 + $0x148] sm:$0xff]
    %v1316 = vld [vmem:[#allocation10 + $0x150] sm:$0xff]
    %v1317 = vld [vmem:[#allocation10 + $0x158] sm:$0xff]
    %v1318 = vld [vmem:[#allocation10 + $0x160] sm:$0xff]
    %v1319 = vld [vmem:[#allocation10 + $0x168] sm:$0xff]
    %v1320 = vld [vmem:[#allocation10 + $0x170] sm:$0xff]
    %v1321 = vld [vmem:[#allocation10 + $0x178] sm:$0xff]
    %v1370 = vunpack.c.l.b16 %v1274
    %v1371 = vunpack.c.h.b16 %v1274
    %v1372 = vunpack.c.l.b16 %v1275
    %v1373 = vunpack.c.h.b16 %v1275
    %v1374 = vunpack.c.l.b16 %v1276
    %v1375 = vunpack.c.h.b16 %v1276
    %v1376 = vunpack.c.l.b16 %v1277
    %v1377 = vunpack.c.h.b16 %v1277
    %v1378 = vunpack.c.l.b16 %v1278
    %v1379 = vunpack.c.h.b16 %v1278
    %v1380 = vunpack.c.l.b16 %v1279
    %v1381 = vunpack.c.h.b16 %v1279
    %v1382 = vunpack.c.l.b16 %v1280
    %v1383 = vunpack.c.h.b16 %v1280
    %v1384 = vunpack.c.l.b16 %v1281
    %v1385 = vunpack.c.h.b16 %v1281
    %v1386 = vunpack.c.l.b16 %v1282
    %v1387 = vunpack.c.h.b16 %v1282
    %v1388 = vunpack.c.l.b16 %v1283
    %v1389 = vunpack.c.h.b16 %v1283
    %v1390 = vunpack.c.l.b16 %v1284
    %v1391 = vunpack.c.h.b16 %v1284
    %v1392 = vunpack.c.l.b16 %v1285
    %v1393 = vunpack.c.h.b16 %v1285
    %v1394 = vunpack.c.l.b16 %v1286
    %v1395 = vunpack.c.h.b16 %v1286
    %v1396 = vunpack.c.l.b16 %v1287
    %v1397 = vunpack.c.h.b16 %v1287
    %v1398 = vunpack.c.l.b16 %v1288
    %v1399 = vunpack.c.h.b16 %v1288
    %v1400 = vunpack.c.l.b16 %v1289
    %v1401 = vunpack.c.h.b16 %v1289
    %v1402 = vunpack.c.l.b16 %v1290
    %v1403 = vunpack.c.h.b16 %v1290
    %v1404 = vunpack.c.l.b16 %v1291
    %v1405 = vunpack.c.h.b16 %v1291
    %v1406 = vunpack.c.l.b16 %v1292
    %v1407 = vunpack.c.h.b16 %v1292
    %v1408 = vunpack.c.l.b16 %v1293
    %v1409 = vunpack.c.h.b16 %v1293
    %v1410 = vunpack.c.l.b16 %v1294
    %v1411 = vunpack.c.h.b16 %v1294
    %v1412 = vunpack.c.l.b16 %v1295
    %v1413 = vunpack.c.h.b16 %v1295
    %v1414 = vunpack.c.l.b16 %v1296
    %v1415 = vunpack.c.h.b16 %v1296
    %v1416 = vunpack.c.l.b16 %v1297
    %v1417 = vunpack.c.h.b16 %v1297
    %v1418 = vunpack.c.l.b16 %v1298
    %v1419 = vunpack.c.h.b16 %v1298
    %v1420 = vunpack.c.l.b16 %v1299
    %v1421 = vunpack.c.h.b16 %v1299
    %v1422 = vunpack.c.l.b16 %v1300
    %v1423 = vunpack.c.h.b16 %v1300
    %v1424 = vunpack.c.l.b16 %v1301
    %v1425 = vunpack.c.h.b16 %v1301
    %v1426 = vunpack.c.l.b16 %v1302
    %v1427 = vunpack.c.h.b16 %v1302
    %v1428 = vunpack.c.l.b16 %v1303
    %v1429 = vunpack.c.h.b16 %v1303
    %v1430 = vunpack.c.l.b16 %v1304
    %v1431 = vunpack.c.h.b16 %v1304
    %v1432 = vunpack.c.l.b16 %v1305
    %v1433 = vunpack.c.h.b16 %v1305
    %v1434 = vunpack.c.l.b16 %v1306
    %v1435 = vunpack.c.h.b16 %v1306
    %v1436 = vunpack.c.l.b16 %v1307
    %v1437 = vunpack.c.h.b16 %v1307
    %v1438 = vunpack.c.l.b16 %v1308
    %v1439 = vunpack.c.h.b16 %v1308
    %v1440 = vunpack.c.l.b16 %v1309
    %v1441 = vunpack.c.h.b16 %v1309
    %v1442 = vunpack.c.l.b16 %v1310
    %v1443 = vunpack.c.h.b16 %v1310
    %v1444 = vunpack.c.l.b16 %v1311
    %v1445 = vunpack.c.h.b16 %v1311
    %v1446 = vunpack.c.l.b16 %v1312
    %v1447 = vunpack.c.h.b16 %v1312
    %v1448 = vunpack.c.l.b16 %v1313
    %v1449 = vunpack.c.h.b16 %v1313
    %v1450 = vunpack.c.l.b16 %v1314
    %v1451 = vunpack.c.h.b16 %v1314
    %v1452 = vunpack.c.l.b16 %v1315
    %v1453 = vunpack.c.h.b16 %v1315
    %v1454 = vunpack.c.l.b16 %v1316
    %v1455 = vunpack.c.h.b16 %v1316
    %v1456 = vunpack.c.l.b16 %v1317
    %v1457 = vunpack.c.h.b16 %v1317
    %v1458 = vunpack.c.l.b16 %v1318
    %v1459 = vunpack.c.h.b16 %v1318
    %v1460 = vunpack.c.l.b16 %v1319
    %v1461 = vunpack.c.h.b16 %v1319
    %v1462 = vunpack.c.l.b16 %v1320
    %v1463 = vunpack.c.h.b16 %v1320
    %v1464 = vunpack.c.l.b16 %v1321
    %v1465 = vunpack.c.h.b16 %v1321
    %v1466 = vpack.c.b16 %v1372, %v1370
    %v1467 = vpack.c.b16 %v1373, %v1371
    %v1468 = vpack.c.b16 %v1376, %v1374
    %v1469 = vpack.c.b16 %v1377, %v1375
    %v1470 = vpack.c.b16 %v1380, %v1378
    %v1471 = vpack.c.b16 %v1381, %v1379
    %v1472 = vpack.c.b16 %v1384, %v1382
    %v1473 = vpack.c.b16 %v1385, %v1383
    %v1474 = vpack.c.b16 %v1388, %v1386
    %v1475 = vpack.c.b16 %v1389, %v1387
    %v1476 = vpack.c.b16 %v1392, %v1390
    %v1477 = vpack.c.b16 %v1393, %v1391
    %v1478 = vpack.c.b16 %v1396, %v1394
    %v1479 = vpack.c.b16 %v1397, %v1395
    %v1480 = vpack.c.b16 %v1400, %v1398
    %v1481 = vpack.c.b16 %v1401, %v1399
    %v1482 = vpack.c.b16 %v1404, %v1402
    %v1483 = vpack.c.b16 %v1405, %v1403
    %v1484 = vpack.c.b16 %v1408, %v1406
    %v1485 = vpack.c.b16 %v1409, %v1407
    %v1486 = vpack.c.b16 %v1412, %v1410
    %v1487 = vpack.c.b16 %v1413, %v1411
    %v1488 = vpack.c.b16 %v1416, %v1414
    %v1489 = vpack.c.b16 %v1417, %v1415
    %v1490 = vpack.c.b16 %v1420, %v1418
    %v1491 = vpack.c.b16 %v1421, %v1419
    %v1492 = vpack.c.b16 %v1424, %v1422
    %v1493 = vpack.c.b16 %v1425, %v1423
    %v1494 = vpack.c.b16 %v1428, %v1426
    %v1495 = vpack.c.b16 %v1429, %v1427
    %v1496 = vpack.c.b16 %v1432, %v1430
    %v1497 = vpack.c.b16 %v1433, %v1431
    %v1498 = vpack.c.b16 %v1436, %v1434
    %v1499 = vpack.c.b16 %v1437, %v1435
    %v1500 = vpack.c.b16 %v1440, %v1438
    %v1501 = vpack.c.b16 %v1441, %v1439
    %v1502 = vpack.c.b16 %v1444, %v1442
    %v1503 = vpack.c.b16 %v1445, %v1443
    %v1504 = vpack.c.b16 %v1448, %v1446
    %v1505 = vpack.c.b16 %v1449, %v1447
    %v1506 = vpack.c.b16 %v1452, %v1450
    %v1507 = vpack.c.b16 %v1453, %v1451
    %v1508 = vpack.c.b16 %v1456, %v1454
    %v1509 = vpack.c.b16 %v1457, %v1455
    %v1510 = vpack.c.b16 %v1460, %v1458
    %v1511 = vpack.c.b16 %v1461, %v1459
    %v1512 = vpack.c.b16 %v1464, %v1462
    %v1513 = vpack.c.b16 %v1465, %v1463
    %1562 = vmatprep.subr.bf16.mxu0 %v1481
    %1563 = vmatpush1.bf16.msra.mxu0 %v1480
    %1564 = vmatprep.subr.bf16.mxu0 %v1479
    %1565 = vmatpush1.bf16.msra.mxu0 %v1478
    %1566 = vmatprep.subr.bf16.mxu0 %v1477
    %1567 = vmatpush1.bf16.msra.mxu0 %v1476
    %1568 = vmatprep.subr.bf16.mxu0 %v1475
    %1569 = vmatpush1.bf16.msra.mxu0 %v1474
    %1570 = vmatprep.subr.bf16.mxu0 %v1473
    %1571 = vmatpush1.bf16.msra.mxu0 %v1472
    %1572 = vmatprep.subr.bf16.mxu0 %v1471
    %1573 = vmatpush1.bf16.msra.mxu0 %v1470
    %1574 = vmatprep.subr.bf16.mxu0 %v1469
    %1575 = vmatpush1.bf16.msra.mxu0 %v1468
    %1576 = vmatprep.subr.bf16.mxu0 %v1467
    %1577 = vmatpush1.bf16.msra.mxu0 %v1466
    %1578 = vmatprep.subr.bf16.mxu0 %v1497
    %1579 = vmatpush2.bf16.msra.mxu0 %v1496
    %1580 = vmatprep.subr.bf16.mxu0 %v1495
    %1581 = vmatpush2.bf16.msra.mxu0 %v1494
    %1582 = vmatprep.subr.bf16.mxu0 %v1493
    %1583 = vmatpush2.bf16.msra.mxu0 %v1492
    %1584 = vmatprep.subr.bf16.mxu0 %v1491
    %1585 = vmatpush2.bf16.msra.mxu0 %v1490
    %1586 = vmatprep.subr.bf16.mxu0 %v1489
    %1587 = vmatpush2.bf16.msra.mxu0 %v1488
    %1588 = vmatprep.subr.bf16.mxu0 %v1487
    %1589 = vmatpush2.bf16.msra.mxu0 %v1486
    %1590 = vmatprep.subr.bf16.mxu0 %v1485
    %1591 = vmatpush2.bf16.msra.mxu0 %v1484
    %1592 = vmatprep.subr.bf16.mxu0 %v1483
    %1593 = vmatpush2.bf16.msra.mxu0 %v1482
    %1594 = vmatprep.mubr.bf16.mxu0 %v1272
    %1595 = vmatmul.mubr.bf16.gmra.mxu0 %v1271
    %v1596 = vpop.f32.mrf.mxu0
    %v1597 = vadd.f32 0.0, %v1596
    %v1598 = vpop.f32.mrf.mxu0
    %v1599 = vadd.f32 0.0, %v1598
    %v1600 = vpop.f32.mrf.mxu0
    %v1601 = vadd.f32 0.0, %v1600
    %v1602 = vpop.f32.mrf.mxu0
    %v1603 = vadd.f32 0.0, %v1602
    %1604 = vdwg.mxu0
    %1605 = vmatprep.subr.bf16.mxu0 %v1513
    %1606 = vmatpush1.bf16.msra.mxu0 %v1512
    %1607 = vmatprep.subr.bf16.mxu0 %v1511
    %1608 = vmatpush1.bf16.msra.mxu0 %v1510
    %1609 = vmatprep.subr.bf16.mxu0 %v1509
    %1610 = vmatpush1.bf16.msra.mxu0 %v1508
    %1611 = vmatprep.subr.bf16.mxu0 %v1507
    %1612 = vmatpush1.bf16.msra.mxu0 %v1506
    %1613 = vmatprep.subr.bf16.mxu0 %v1505
    %1614 = vmatpush1.bf16.msra.mxu0 %v1504
    %1615 = vmatprep.subr.bf16.mxu0 %v1503
    %1616 = vmatpush1.bf16.msra.mxu0 %v1502
    %1617 = vmatprep.subr.bf16.mxu0 %v1501
    %1618 = vmatpush1.bf16.msra.mxu0 %v1500
    %1619 = vmatprep.subr.bf16.mxu0 %v1499
    %1620 = vmatpush1.bf16.msra.mxu0 %v1498
    %1621 = vmatprep.subr.bf16.mxu0 0
    %1622 = vmatpush2.bf16.msra.mxu0 0
    %1623 = vmatprep.subr.bf16.mxu0 0
    %1624 = vmatpush2.bf16.msra.mxu0 0
    %1625 = vmatprep.subr.bf16.mxu0 0
    %1626 = vmatpush2.bf16.msra.mxu0 0
    %1627 = vmatprep.subr.bf16.mxu0 0
    %1628 = vmatpush2.bf16.msra.mxu0 0
    %1629 = vmatprep.subr.bf16.mxu0 0
    %1630 = vmatpush2.bf16.msra.mxu0 0
    %1631 = vmatprep.subr.bf16.mxu0 0
    %1632 = vmatpush2.bf16.msra.mxu0 0
    %1633 = vmatprep.subr.bf16.mxu0 0
    %1634 = vmatpush2.bf16.msra.mxu0 0
    %1635 = vmatprep.subr.bf16.mxu0 0
    %1636 = vmatpush2.bf16.msra.mxu0 0
    %1637 = vmatprep.mubr.bf16.mxu0 0
    %1638 = vmatmul.mubr.bf16.gmra.mxu0 %v1273
    %v1639 = vpop.f32.mrf.mxu0
    %v1640 = vadd.f32 %v1597, %v1639
    %v1641 = vpop.f32.mrf.mxu0
    %v1642 = vadd.f32 %v1599, %v1641
    %v1643 = vpop.f32.mrf.mxu0
    %v1644 = vadd.f32 %v1601, %v1643
    %v1645 = vpop.f32.mrf.mxu0
    %v1646 = vadd.f32 %v1603, %v1645
    %1647 = vdwg.mxu0
    %1648 = vst [vmem:[%s7] sm:$0xff] %v1640
    %1649 = vst [vmem:[%s7 + $0x8] sm:$0xff] %v1642
    %1650 = vst [vmem:[%s7 + $0x10] sm:$0xff] %v1644
    %1651 = vst [vmem:[%s7 + $0x18] sm:$0xff] %v1646
    // Predicated region
    $region54: #{ae_relu_forward.1} parent=1 // pred_check
      _
    $region55: #{ae_relu_forward.1} parent=1 // pred_check_branch
      %1653 = sbr.rel (0) target = $region57
    $region56: #{ae_relu_forward.1} parent=1 // pred_region
      _
    $region57: #{ae_relu_forward.1} parent=1 // pred_fallthru
      _
    // Predicated region
    $region58: #{ae_relu_forward.1} parent=1 // pred_check
      _
    $region59: #{ae_relu_forward.1} parent=1 // pred_check_branch
      %1655 = sbr.rel (0) target = $region61
    $region60: #{ae_relu_forward.1} parent=1 // pred_region
      _
    $region61: #{ae_relu_forward.1} parent=1 // pred_fallthru
      _
    %1656 = vsyncpa [#allocation3], 1
    %1657 = vsyncpa [#allocation5], 1
    %1658 = vsyncpa [#allocation8], 1
    %1659 = vsyncpa [#allocation11], 1

</llo_original>
